<compile_context>
chip_gen: v7x
topology: tpu7x:2x2x1
jax: 0.10.0
libtpu: 0.0.40
codegen_flags: <defaults>
</compile_context>

<pallas_src>
import numpy as np

import jax
import jax.numpy as jnp
from jax.experimental import pallas as pl
from jax.experimental.pallas import tpu as pltpu

EPS = 1e-5


# ------------------------------ static planning ------------------------------

def _build_plan(config, N, H, W):
    """Static per-geometry plan: y1/smat/weight layouts, roll shifts, perm."""
    M = N * H * W
    c0 = config[0][0]

    # kxk branches sorted by pad descending so that, for any stencil offset,
    # the branches needing it are a contiguous prefix of the fused y1 slab.
    br = []
    for i in range(1, len(config)):
        k, ca, cb = config[i]
        br.append({"k": k, "pad": (k - 1) // 2, "ca": ca, "cb": cb, "orig": i})
    br.sort(key=lambda b: -b["pad"])

    red = out = 0
    for b in br:
        b["red_base"] = red    # row of this branch's 1x1 (reduce) output in y1
        b["out_base"] = out    # row of this branch's kxk output in yb / o_ref
        red += b["ca"]
        out += b["cb"]
    R, CB = red, out

    # Union of the branch stencils, most-shared offsets first (bigger fused
    # rolls; their 16-row smat blocks stay 8-sublane aligned).
    offsets = []
    if br:
        max_pad = br[0]["pad"]
        for dy in range(-max_pad, max_pad + 1):
            for dx in range(-max_pad, max_pad + 1):
                r = max(abs(dy), abs(dx))
                nb = sum(1 for b in br if b["pad"] >= r)
                rows = sum(b["ca"] for b in br[:nb])
                offsets.append({"dy": dy, "dx": dx, "nb": nb, "rows": rows})
        offsets.sort(key=lambda o: (-o["nb"], o["dy"], o["dx"]))

    base = 0
    mask_idx = 0
    for o in offsets:
        o["base"] = base
        base += o["rows"]
        o["shift"] = (-(o["dy"] * W + o["dx"])) % M
        if o["dy"] == 0 and o["dx"] == 0:
            o["mask"] = None                      # center tap: no roll, no mask
        else:
            o["mask"] = mask_idx
            mask_idx += 1
    S = base
    n_masks = mask_idx

    # Kernel output channel order is [kxk branches (sorted), branch0] so every
    # in-kernel store starts 8-aligned; `perm` maps back to PyTorch order.
    perm = list(range(CB, CB + c0))
    for i in range(1, len(config)):
        b = next(bb for bb in br if bb["orig"] == i)
        perm += list(range(b["out_base"], b["out_base"] + b["cb"]))
    perm = np.asarray(perm, dtype=np.int32)

    return dict(M=M, c0=c0, R=R, CB=CB, S=S, n_masks=n_masks,
                branches=br, offsets=offsets, perm=perm, N=N, H=H, W=W)


def _build_masks(plan):
    """(n_masks, M) f32 validity masks, one row per non-center offset."""
    N, H, W, M = plan["N"], plan["H"], plan["W"], plan["M"]
    ys = np.broadcast_to(np.arange(H).reshape(1, H, 1), (N, H, W)).reshape(M)
    xs = np.broadcast_to(np.arange(W).reshape(1, 1, W), (N, H, W)).reshape(M)
    masks = np.zeros((max(plan["n_masks"], 1), M), np.float32)
    for o in plan["offsets"]:
        if o["mask"] is None:
            continue
        dy, dx = o["dy"], o["dx"]
        valid = ((ys + dy >= 0) & (ys + dy < H) &
                 (xs + dx >= 0) & (xs + dx < W))
        masks[o["mask"]] = valid.astype(np.float32)
    return jnp.asarray(masks)


# --------------------------------- kernel ------------------------------------

def _make_kernel(plan, compute_dtype):
    M = plan["M"]
    inv_m = 1.0 / M
    R, c0, CB, S = plan["R"], plan["c0"], plan["CB"], plan["S"]
    offsets = plan["offsets"]
    has_k = S > 0

    def bn_relu(y):
        # Training-mode BatchNorm2d(affine=False) + ReLU on a (C, M) slab.
        # One-pass stats: the two lane reductions are independent (XLU) and
        # overlap with other work; all BN/ReLU math stays f32.
        s = jnp.sum(y, axis=1, keepdims=True)
        ss = jnp.sum(y * y, axis=1, keepdims=True)
        mean = s * inv_m
        var = ss * inv_m - mean * mean
        return jnp.maximum((y - mean) * jax.lax.rsqrt(var + EPS), 0.0)

    def kernel(*refs):
        if has_k:
            xt_ref, masks_ref, w1_ref, wbig_ref, o_ref, smat_ref = refs
        else:
            xt_ref, w1_ref, o_ref = refs

        # All 1x1 convs (every branch's reduce conv + branch0) fused into one
        # lane-dense MXU matmul.  Row order: [kxk branches sorted by pad desc,
        # branch0], so every later slice is an 8-aligned prefix/suffix.
        y1 = bn_relu(jnp.dot(w1_ref[...], xt_ref[...],
                             preferred_element_type=jnp.float32))

        if has_k:
            # Offset-major fused im2col slab written straight into VMEM
            # scratch: ONE roll + ONE precomputed-mask multiply per stencil
            # offset, shared by every branch that uses that offset.
            for o in offsets:
                rows, base = o["rows"], o["base"]
                slab = y1[0:rows, :]
                if o["mask"] is None:                       # center tap
                    smat_ref[base:base + rows, :] = slab.astype(compute_dtype)
                else:
                    rolled = pltpu.roll(slab, shift=o["shift"], axis=1)
                    m = masks_ref[o["mask"]:o["mask"] + 1, :]   # (1, M)
                    smat_ref[base:base + rows, :] = (rolled * m).astype(
                        compute_dtype)

            # Single block-diagonal MXU matmul covering every kxk branch.
            yb = jnp.dot(wbig_ref[...], smat_ref[...],
                         preferred_element_type=jnp.float32)
            o_ref[0:CB, :] = bn_relu(yb)

        # Branch-0 channels (already BN+ReLU'd in y1) are stored last so all
        # stores above start on an 8-sublane boundary; the wrapper restores
        # PyTorch channel order.
        o_ref[CB:CB + c0, :] = y1[R:R + c0, :]

    return kernel


# -------------------------------- wrapper -------------------------------------

def inception_forward(params, config, x, *, compute_dtype=jnp.float32):
    """NCHW in, NCHW out. One fused pallas_call for the whole inception block."""
    N, cin, H, W = x.shape
    plan = _build_plan(config, N, H, W)
    M, c0, CB, S = plan["M"], plan["c0"], plan["CB"], plan["S"]
    has_k = S > 0

    # Channel-major / spatial-minor slab: lane dim M = N*H*W (lane-dense).
    xt = x.transpose(1, 0, 2, 3).reshape(cin, M).astype(compute_dtype)

    # Conv biases dropped: affine-free training BN subtracts the per-channel
    # mean, so a per-channel bias cancels exactly.
    w1_rows = []
    for b in plan["branches"]:
        wa, _ = params[b["orig"]][0]
        w1_rows.append(wa.reshape(b["ca"], cin))
    w1_rows.append(params[0][0].reshape(c0, cin))
    w1_cat = jnp.concatenate(w1_rows, axis=0).astype(compute_dtype)

    args = [xt]
    scratch = []
    if has_k:
        masks = _build_masks(plan)
        # Block-diagonal kxk weight (CB, S): columns match the offset-major
        # smat layout written by the kernel; zero padding is free MXU slack.
        wbig = jnp.zeros((CB, S), jnp.float32)
        for o in plan["offsets"]:
            for b in plan["branches"][:o["nb"]]:
                kh, kw = o["dy"] + b["pad"], o["dx"] + b["pad"]
                wb, _ = params[b["orig"]][1]
                tap = wb[:, :, kh, kw]                        # (cb, ca)
                r0 = b["out_base"]
                col0 = o["base"] + b["red_base"]
                wbig = wbig.at[r0:r0 + b["cb"], col0:col0 + b["ca"]].set(tap)
        args += [masks, w1_cat, wbig.astype(compute_dtype)]
        scratch = [pltpu.VMEM((S, M), compute_dtype)]
    else:
        args += [w1_cat]

    kernel = _make_kernel(plan, compute_dtype)

    # Shapes here are tiny (<1 MiB total incl. the smat scratch), so a single
    # grid-less VMEM-resident call is optimal: per-grid-step overhead
    # (~0.35 us) and extra HBM round-trips would dominate any pipelining win.
    # Scaling plan for realistic shapes (per review): tile M with a grid sized
    # against v7x's 64 MiB VMEM (double-buffered inputs + output block + the
    # (S, M_tile) smat scratch + the y1 slab under ~half of VMEM), mark the M
    # axis "parallel" (2 TensorCores on v7x), switch BN to a two-pass
    # (per-tile partial sums, then normalize), keep M tiles >= 2048 lanes, use
    # compute_dtype=jnp.bfloat16, and raise vmem_limit_bytes via
    # pltpu.CompilerParams if needed.
    out_flat = pl.pallas_call(
        kernel,
        out_shape=jax.ShapeDtypeStruct((CB + c0, M), jnp.float32),
        scratch_shapes=scratch,
    )(*args)

    out_flat = out_flat[plan["perm"]]            # back to PyTorch channel order
    return out_flat.reshape(CB + c0, N, H, W).transpose(1, 0, 2, 3)


# -------------------------- deterministic params ------------------------------

def init_conv_params(key, cout, cin, k):
    kw, kb = jax.random.split(key)
    fan_in = cin * k * k
    bound = 1.0 / jnp.sqrt(jnp.float32(fan_in))
    w = jax.random.uniform(kw, (cout, cin, k, k), jnp.float32, -bound, bound)
    b = jax.random.uniform(kb, (cout,), jnp.float32, -bound, bound)
    return w, b


def make_inception_params(key, input_size, config):
    keys = jax.random.split(key, 2 * len(config))
    params = [init_conv_params(keys[0], config[0][0], input_size, 1)]
    for i in range(1, len(config)):
        filt, out_a, out_b = config[i]
        wa, ba = init_conv_params(keys[2 * i], out_a, input_size, 1)
        wb, bb = init_conv_params(keys[2 * i + 1], out_b, out_a, filt)
        params.append(((wa, ba), (wb, bb)))
    return params


# ---------------------------- pure-JAX reference ------------------------------

def ref_conv_bn_relu(x, w, b, pad):
    y = jax.lax.conv_general_dilated(
        x, w, window_strides=(1, 1), padding=[(pad, pad), (pad, pad)],
        dimension_numbers=('NCHW', 'OIHW', 'NCHW'))
    y = y + b[None, :, None, None]
    mean = y.mean(axis=(0, 2, 3), keepdims=True)
    var = ((y - mean) ** 2).mean(axis=(0, 2, 3), keepdims=True)
    return jnp.maximum((y - mean) * jax.lax.rsqrt(var + EPS), 0.0)


def ref_inception_forward(params, config, x):
    outs = [ref_conv_bn_relu(x, params[0][0], params[0][1], 0)]
    for i in range(1, len(config)):
        filt = config[i][0]
        (wa, ba), (wb, bb) = params[i]
        h = ref_conv_bn_relu(x, wa, ba, 0)
        outs.append(ref_conv_bn_relu(h, wb, bb, (filt - 1) // 2))
    return jnp.concatenate(outs, axis=1)


# ---------------------------------- main --------------------------------------

if __name__ == "__main__":
    key = jax.random.PRNGKey(0)
    kx, kp = jax.random.split(key)

    # NCHW input, small shapes consistent with the module.
    N, Cin, H, W = 2, 4, 16, 16
    config = [[4], [3, 8, 8], [5, 8, 8]]   # output channels 4 + 8 + 8 = 20

    x = jax.random.normal(kx, (N, Cin, H, W), jnp.float32)
    params = make_inception_params(kp, Cin, config)

    fwd = jax.jit(lambda p, xv: inception_forward(p, config, xv))
    out = jax.block_until_ready(fwd(params, x))

    c_out = config[0][0] + sum(c[2] for c in config[1:])
    assert out.shape == (N, c_out, H, W), out.shape

    ref = jax.block_until_ready(ref_inception_forward(params, config, x))
    err = float(jnp.max(jnp.abs(out - ref)))
    assert err < 2e-3, err

    print("KERNEL_OK")
</pallas_src>

<mosaic_0001>
module attributes {stable_mosaic.version = 11 : i64} {
  func.func @kernel(%arg0: memref<4x512xf32, #tpu.memory_space<vmem>>, %arg1: memref<24x512xf32, #tpu.memory_space<vmem>>, %arg2: memref<20x4xf32, #tpu.memory_space<vmem>>, %arg3: memref<16x272xf32, #tpu.memory_space<vmem>>, %arg4: memref<20x512xf32, #tpu.memory_space<vmem>>, %arg5: memref<272x512xf32, #tpu.memory_space<vmem>>) attributes {dimension_semantics = [], scalar_prefetch = 0 : i64, scratch_operands = 1 : i64, tpu.core_type = #tpu.core_type<tc>} {
    %c0 = arith.constant 0 : index
    %c0_0 = arith.constant 0 : index
    %0 = vector.load %arg2[%c0, %c0_0] : memref<20x4xf32, #tpu.memory_space<vmem>>, vector<20x4xf32>
    %c0_1 = arith.constant 0 : index
    %c0_2 = arith.constant 0 : index
    %1 = vector.load %arg0[%c0_1, %c0_2] : memref<4x512xf32, #tpu.memory_space<vmem>>, vector<4x512xf32>
    %cst = arith.constant dense<0.000000e+00> : vector<20x512xf32>
    %2 = tpu.matmul %0, %1, %cst {dimension_numbers = #tpu.dot_dimension_numbers<[1], [0], [0], [1], [0, 0, 1, 1], [], []>} : vector<20x4xf32>, vector<4x512xf32>, vector<20x512xf32> -> vector<20x512xf32>
    %cst_3 = arith.constant dense<0.000000e+00> : vector<20xf32>
    %3 = vector.multi_reduction <add>, %2, %cst_3 [1] : vector<20x512xf32> to vector<20xf32>
    %4 = vector.shape_cast %3 : vector<20xf32> to vector<20x1xf32>
    %5 = arith.mulf %2, %2 : vector<20x512xf32>
    %cst_4 = arith.constant dense<0.000000e+00> : vector<20xf32>
    %6 = vector.multi_reduction <add>, %5, %cst_4 [1] : vector<20x512xf32> to vector<20xf32>
    %7 = vector.shape_cast %6 : vector<20xf32> to vector<20x1xf32>
    %cst_5 = arith.constant 0.001953125 : f32
    %8 = vector.broadcast %cst_5 : f32 to vector<20x1xf32>
    %9 = arith.mulf %4, %8 : vector<20x1xf32>
    %cst_6 = arith.constant 0.001953125 : f32
    %10 = vector.broadcast %cst_6 : f32 to vector<20x1xf32>
    %11 = arith.mulf %7, %10 : vector<20x1xf32>
    %12 = arith.mulf %9, %9 : vector<20x1xf32>
    %13 = arith.subf %11, %12 : vector<20x1xf32>
    %14 = vector.broadcast %9 : vector<20x1xf32> to vector<20x512xf32>
    %15 = arith.subf %2, %14 : vector<20x512xf32>
    %cst_7 = arith.constant 9.99999974E-6 : f32
    %16 = vector.broadcast %cst_7 : f32 to vector<20x1xf32>
    %17 = arith.addf %13, %16 : vector<20x1xf32>
    %18 = math.rsqrt %17 : vector<20x1xf32>
    %19 = vector.broadcast %18 : vector<20x1xf32> to vector<20x512xf32>
    %20 = arith.mulf %15, %19 : vector<20x512xf32>
    %cst_8 = arith.constant 0.000000e+00 : f32
    %21 = vector.broadcast %cst_8 : f32 to vector<20x512xf32>
    %22 = arith.maximumf %20, %21 : vector<20x512xf32>
    %23 = vector.extract_strided_slice %22 {offsets = [0, 0], sizes = [16, 512], strides = [1, 1]} : vector<20x512xf32> to vector<16x512xf32>
    %c17_i32 = arith.constant 17 : i32
    %24 = tpu.dynamic_rotate %23 by %c17_i32 dim 1 : vector<16x512xf32>, i32 -> vector<16x512xf32>
    %c0_9 = arith.constant 0 : index
    %c0_10 = arith.constant 0 : index
    %25 = vector.load %arg1[%c0_9, %c0_10] : memref<24x512xf32, #tpu.memory_space<vmem>>, vector<1x512xf32>
    %26 = vector.broadcast %25 : vector<1x512xf32> to vector<16x512xf32>
    %27 = arith.mulf %24, %26 : vector<16x512xf32>
    %c0_11 = arith.constant 0 : index
    %c0_12 = arith.constant 0 : index
    %28 = vector.load %arg5[%c0_11, %c0_12] : memref<272x512xf32, #tpu.memory_space<vmem>>, vector<16x512xf32>
    tpu.vector_store %arg5[%c0_11, %c0_12], %27 {strides = array<i32>} : memref<272x512xf32, #tpu.memory_space<vmem>>, vector<16x512xf32>,
    %29 = vector.extract_strided_slice %22 {offsets = [0, 0], sizes = [16, 512], strides = [1, 1]} : vector<20x512xf32> to vector<16x512xf32>
    %c16_i32 = arith.constant 16 : i32
    %30 = tpu.dynamic_rotate %29 by %c16_i32 dim 1 : vector<16x512xf32>, i32 -> vector<16x512xf32>
    %c1 = arith.constant 1 : index
    %c0_13 = arith.constant 0 : index
    %31 = vector.load %arg1[%c1, %c0_13] : memref<24x512xf32, #tpu.memory_space<vmem>>, vector<1x512xf32>
    %32 = vector.broadcast %31 : vector<1x512xf32> to vector<16x512xf32>
    %33 = arith.mulf %30, %32 : vector<16x512xf32>
    %c16 = arith.constant 16 : index
    %c0_14 = arith.constant 0 : index
    %34 = vector.load %arg5[%c16, %c0_14] : memref<272x512xf32, #tpu.memory_space<vmem>>, vector<16x512xf32>
    tpu.vector_store %arg5[%c16, %c0_14], %33 {strides = array<i32>} : memref<272x512xf32, #tpu.memory_space<vmem>>, vector<16x512xf32>,
    %35 = vector.extract_strided_slice %22 {offsets = [0, 0], sizes = [16, 512], strides = [1, 1]} : vector<20x512xf32> to vector<16x512xf32>
    %c15_i32 = arith.constant 15 : i32
    %36 = tpu.dynamic_rotate %35 by %c15_i32 dim 1 : vector<16x512xf32>, i32 -> vector<16x512xf32>
    %c2 = arith.constant 2 : index
    %c0_15 = arith.constant 0 : index
    %37 = vector.load %arg1[%c2, %c0_15] : memref<24x512xf32, #tpu.memory_space<vmem>>, vector<1x512xf32>
    %38 = vector.broadcast %37 : vector<1x512xf32> to vector<16x512xf32>
    %39 = arith.mulf %36, %38 : vector<16x512xf32>
    %c32 = arith.constant 32 : index
    %c0_16 = arith.constant 0 : index
    %40 = vector.load %arg5[%c32, %c0_16] : memref<272x512xf32, #tpu.memory_space<vmem>>, vector<16x512xf32>
    tpu.vector_store %arg5[%c32, %c0_16], %39 {strides = array<i32>} : memref<272x512xf32, #tpu.memory_space<vmem>>, vector<16x512xf32>,
    %41 = vector.extract_strided_slice %22 {offsets = [0, 0], sizes = [16, 512], strides = [1, 1]} : vector<20x512xf32> to vector<16x512xf32>
    %c1_i32 = arith.constant 1 : i32
    %42 = tpu.dynamic_rotate %41 by %c1_i32 dim 1 : vector<16x512xf32>, i32 -> vector<16x512xf32>
    %c3 = arith.constant 3 : index
    %c0_17 = arith.constant 0 : index
    %43 = vector.load %arg1[%c3, %c0_17] : memref<24x512xf32, #tpu.memory_space<vmem>>, vector<1x512xf32>
    %44 = vector.broadcast %43 : vector<1x512xf32> to vector<16x512xf32>
    %45 = arith.mulf %42, %44 : vector<16x512xf32>
    %c48 = arith.constant 48 : index
    %c0_18 = arith.constant 0 : index
    %46 = vector.load %arg5[%c48, %c0_18] : memref<272x512xf32, #tpu.memory_space<vmem>>, vector<16x512xf32>
    tpu.vector_store %arg5[%c48, %c0_18], %45 {strides = array<i32>} : memref<272x512xf32, #tpu.memory_space<vmem>>, vector<16x512xf32>,
    %47 = vector.extract_strided_slice %22 {offsets = [0, 0], sizes = [16, 512], strides = [1, 1]} : vector<20x512xf32> to vector<16x512xf32>
    %c64 = arith.constant 64 : index
    %c0_19 = arith.constant 0 : index
    %48 = vector.load %arg5[%c64, %c0_19] : memref<272x512xf32, #tpu.memory_space<vmem>>, vector<16x512xf32>
    tpu.vector_store %arg5[%c64, %c0_19], %47 {strides = array<i32>} : memref<272x512xf32, #tpu.memory_space<vmem>>, vector<16x512xf32>,
    %49 = vector.extract_strided_slice %22 {offsets = [0, 0], sizes = [16, 512], strides = [1, 1]} : vector<20x512xf32> to vector<16x512xf32>
    %c511_i32 = arith.constant 511 : i32
    %50 = tpu.dynamic_rotate %49 by %c511_i32 dim 1 : vector<16x512xf32>, i32 -> vector<16x512xf32>
    %c4 = arith.constant 4 : index
    %c0_20 = arith.constant 0 : index
    %51 = vector.load %arg1[%c4, %c0_20] : memref<24x512xf32, #tpu.memory_space<vmem>>, vector<1x512xf32>
    %52 = vector.broadcast %51 : vector<1x512xf32> to vector<16x512xf32>
    %53 = arith.mulf %50, %52 : vector<16x512xf32>
    %c80 = arith.constant 80 : index
    %c0_21 = arith.constant 0 : index
    %54 = vector.load %arg5[%c80, %c0_21] : memref<272x512xf32, #tpu.memory_space<vmem>>, vector<16x512xf32>
    tpu.vector_store %arg5[%c80, %c0_21], %53 {strides = array<i32>} : memref<272x512xf32, #tpu.memory_space<vmem>>, vector<16x512xf32>,
    %55 = vector.extract_strided_slice %22 {offsets = [0, 0], sizes = [16, 512], strides = [1, 1]} : vector<20x512xf32> to vector<16x512xf32>
    %c497_i32 = arith.constant 497 : i32
    %56 = tpu.dynamic_rotate %55 by %c497_i32 dim 1 : vector<16x512xf32>, i32 -> vector<16x512xf32>
    %c5 = arith.constant 5 : index
    %c0_22 = arith.constant 0 : index
    %57 = vector.load %arg1[%c5, %c0_22] : memref<24x512xf32, #tpu.memory_space<vmem>>, vector<1x512xf32>
    %58 = vector.broadcast %57 : vector<1x512xf32> to vector<16x512xf32>
    %59 = arith.mulf %56, %58 : vector<16x512xf32>
    %c96 = arith.constant 96 : index
    %c0_23 = arith.constant 0 : index
    %60 = vector.load %arg5[%c96, %c0_23] : memref<272x512xf32, #tpu.memory_space<vmem>>, vector<16x512xf32>
    tpu.vector_store %arg5[%c96, %c0_23], %59 {strides = array<i32>} : memref<272x512xf32, #tpu.memory_space<vmem>>, vector<16x512xf32>,
    %61 = vector.extract_strided_slice %22 {offsets = [0, 0], sizes = [16, 512], strides = [1, 1]} : vector<20x512xf32> to vector<16x512xf32>
    %c496_i32 = arith.constant 496 : i32
    %62 = tpu.dynamic_rotate %61 by %c496_i32 dim 1 : vector<16x512xf32>, i32 -> vector<16x512xf32>
    %c6 = arith.constant 6 : index
    %c0_24 = arith.constant 0 : index
    %63 = vector.load %arg1[%c6, %c0_24] : memref<24x512xf32, #tpu.memory_space<vmem>>, vector<1x512xf32>
    %64 = vector.broadcast %63 : vector<1x512xf32> to vector<16x512xf32>
    %65 = arith.mulf %62, %64 : vector<16x512xf32>
    %c112 = arith.constant 112 : index
    %c0_25 = arith.constant 0 : index
    %66 = vector.load %arg5[%c112, %c0_25] : memref<272x512xf32, #tpu.memory_space<vmem>>, vector<16x512xf32>
    tpu.vector_store %arg5[%c112, %c0_25], %65 {strides = array<i32>} : memref<272x512xf32, #tpu.memory_space<vmem>>, vector<16x512xf32>,
    %67 = vector.extract_strided_slice %22 {offsets = [0, 0], sizes = [16, 512], strides = [1, 1]} : vector<20x512xf32> to vector<16x512xf32>
    %c495_i32 = arith.constant 495 : i32
    %68 = tpu.dynamic_rotate %67 by %c495_i32 dim 1 : vector<16x512xf32>, i32 -> vector<16x512xf32>
    %c7 = arith.constant 7 : index
    %c0_26 = arith.constant 0 : index
    %69 = vector.load %arg1[%c7, %c0_26] : memref<24x512xf32, #tpu.memory_space<vmem>>, vector<1x512xf32>
    %70 = vector.broadcast %69 : vector<1x512xf32> to vector<16x512xf32>
    %71 = arith.mulf %68, %70 : vector<16x512xf32>
    %c128 = arith.constant 128 : index
    %c0_27 = arith.constant 0 : index
    %72 = vector.load %arg5[%c128, %c0_27] : memref<272x512xf32, #tpu.memory_space<vmem>>, vector<16x512xf32>
    tpu.vector_store %arg5[%c128, %c0_27], %71 {strides = array<i32>} : memref<272x512xf32, #tpu.memory_space<vmem>>, vector<16x512xf32>,
    %73 = vector.extract_strided_slice %22 {offsets = [0, 0], sizes = [8, 512], strides = [1, 1]} : vector<20x512xf32> to vector<8x512xf32>
    %c34_i32 = arith.constant 34 : i32
    %74 = tpu.dynamic_rotate %73 by %c34_i32 dim 1 : vector<8x512xf32>, i32 -> vector<8x512xf32>
    %c8 = arith.constant 8 : index
    %c0_28 = arith.constant 0 : index
    %75 = vector.load %arg1[%c8, %c0_28] : memref<24x512xf32, #tpu.memory_space<vmem>>, vector<1x512xf32>
    %76 = vector.broadcast %75 : vector<1x512xf32> to vector<8x512xf32>
    %77 = arith.mulf %74, %76 : vector<8x512xf32>
    %c144 = arith.constant 144 : index
    %c0_29 = arith.constant 0 : index
    %78 = vector.load %arg5[%c144, %c0_29] : memref<272x512xf32, #tpu.memory_space<vmem>>, vector<8x512xf32>
    tpu.vector_store %arg5[%c144, %c0_29], %77 {strides = array<i32>} : memref<272x512xf32, #tpu.memory_space<vmem>>, vector<8x512xf32>,
    %79 = vector.extract_strided_slice %22 {offsets = [0, 0], sizes = [8, 512], strides = [1, 1]} : vector<20x512xf32> to vector<8x512xf32>
    %c33_i32 = arith.constant 33 : i32
    %80 = tpu.dynamic_rotate %79 by %c33_i32 dim 1 : vector<8x512xf32>, i32 -> vector<8x512xf32>
    %c9 = arith.constant 9 : index
    %c0_30 = arith.constant 0 : index
    %81 = vector.load %arg1[%c9, %c0_30] : memref<24x512xf32, #tpu.memory_space<vmem>>, vector<1x512xf32>
    %82 = vector.broadcast %81 : vector<1x512xf32> to vector<8x512xf32>
    %83 = arith.mulf %80, %82 : vector<8x512xf32>
    %c152 = arith.constant 152 : index
    %c0_31 = arith.constant 0 : index
    %84 = vector.load %arg5[%c152, %c0_31] : memref<272x512xf32, #tpu.memory_space<vmem>>, vector<8x512xf32>
    tpu.vector_store %arg5[%c152, %c0_31], %83 {strides = array<i32>} : memref<272x512xf32, #tpu.memory_space<vmem>>, vector<8x512xf32>,
    %85 = vector.extract_strided_slice %22 {offsets = [0, 0], sizes = [8, 512], strides = [1, 1]} : vector<20x512xf32> to vector<8x512xf32>
    %c32_i32 = arith.constant 32 : i32
    %86 = tpu.dynamic_rotate %85 by %c32_i32 dim 1 : vector<8x512xf32>, i32 -> vector<8x512xf32>
    %c10 = arith.constant 10 : index
    %c0_32 = arith.constant 0 : index
    %87 = vector.load %arg1[%c10, %c0_32] : memref<24x512xf32, #tpu.memory_space<vmem>>, vector<1x512xf32>
    %88 = vector.broadcast %87 : vector<1x512xf32> to vector<8x512xf32>
    %89 = arith.mulf %86, %88 : vector<8x512xf32>
    %c160 = arith.constant 160 : index
    %c0_33 = arith.constant 0 : index
    %90 = vector.load %arg5[%c160, %c0_33] : memref<272x512xf32, #tpu.memory_space<vmem>>, vector<8x512xf32>
    tpu.vector_store %arg5[%c160, %c0_33], %89 {strides = array<i32>} : memref<272x512xf32, #tpu.memory_space<vmem>>, vector<8x512xf32>,
    %91 = vector.extract_strided_slice %22 {offsets = [0, 0], sizes = [8, 512], strides = [1, 1]} : vector<20x512xf32> to vector<8x512xf32>
    %c31_i32 = arith.constant 31 : i32
    %92 = tpu.dynamic_rotate %91 by %c31_i32 dim 1 : vector<8x512xf32>, i32 -> vector<8x512xf32>
    %c11 = arith.constant 11 : index
    %c0_34 = arith.constant 0 : index
    %93 = vector.load %arg1[%c11, %c0_34] : memref<24x512xf32, #tpu.memory_space<vmem>>, vector<1x512xf32>
    %94 = vector.broadcast %93 : vector<1x512xf32> to vector<8x512xf32>
    %95 = arith.mulf %92, %94 : vector<8x512xf32>
    %c168 = arith.constant 168 : index
    %c0_35 = arith.constant 0 : index
    %96 = vector.load %arg5[%c168, %c0_35] : memref<272x512xf32, #tpu.memory_space<vmem>>, vector<8x512xf32>
    tpu.vector_store %arg5[%c168, %c0_35], %95 {strides = array<i32>} : memref<272x512xf32, #tpu.memory_space<vmem>>, vector<8x512xf32>,
    %97 = vector.extract_strided_slice %22 {offsets = [0, 0], sizes = [8, 512], strides = [1, 1]} : vector<20x512xf32> to vector<8x512xf32>
    %c30_i32 = arith.constant 30 : i32
    %98 = tpu.dynamic_rotate %97 by %c30_i32 dim 1 : vector<8x512xf32>, i32 -> vector<8x512xf32>
    %c12 = arith.constant 12 : index
    %c0_36 = arith.constant 0 : index
    %99 = vector.load %arg1[%c12, %c0_36] : memref<24x512xf32, #tpu.memory_space<vmem>>, vector<1x512xf32>
    %100 = vector.broadcast %99 : vector<1x512xf32> to vector<8x512xf32>
    %101 = arith.mulf %98, %100 : vector<8x512xf32>
    %c176 = arith.constant 176 : index
    %c0_37 = arith.constant 0 : index
    %102 = vector.load %arg5[%c176, %c0_37] : memref<272x512xf32, #tpu.memory_space<vmem>>, vector<8x512xf32>
    tpu.vector_store %arg5[%c176, %c0_37], %101 {strides = array<i32>} : memref<272x512xf32, #tpu.memory_space<vmem>>, vector<8x512xf32>,
    %103 = vector.extract_strided_slice %22 {offsets = [0, 0], sizes = [8, 512], strides = [1, 1]} : vector<20x512xf32> to vector<8x512xf32>
    %c18_i32 = arith.constant 18 : i32
    %104 = tpu.dynamic_rotate %103 by %c18_i32 dim 1 : vector<8x512xf32>, i32 -> vector<8x512xf32>
    %c13 = arith.constant 13 : index
    %c0_38 = arith.constant 0 : index
    %105 = vector.load %arg1[%c13, %c0_38] : memref<24x512xf32, #tpu.memory_space<vmem>>, vector<1x512xf32>
    %106 = vector.broadcast %105 : vector<1x512xf32> to vector<8x512xf32>
    %107 = arith.mulf %104, %106 : vector<8x512xf32>
    %c184 = arith.constant 184 : index
    %c0_39 = arith.constant 0 : index
    %108 = vector.load %arg5[%c184, %c0_39] : memref<272x512xf32, #tpu.memory_space<vmem>>, vector<8x512xf32>
    tpu.vector_store %arg5[%c184, %c0_39], %107 {strides = array<i32>} : memref<272x512xf32, #tpu.memory_space<vmem>>, vector<8x512xf32>,
    %109 = vector.extract_strided_slice %22 {offsets = [0, 0], sizes = [8, 512], strides = [1, 1]} : vector<20x512xf32> to vector<8x512xf32>
    %c14_i32 = arith.constant 14 : i32
    %110 = tpu.dynamic_rotate %109 by %c14_i32 dim 1 : vector<8x512xf32>, i32 -> vector<8x512xf32>
    %c14 = arith.constant 14 : index
    %c0_40 = arith.constant 0 : index
    %111 = vector.load %arg1[%c14, %c0_40] : memref<24x512xf32, #tpu.memory_space<vmem>>, vector<1x512xf32>
    %112 = vector.broadcast %111 : vector<1x512xf32> to vector<8x512xf32>
    %113 = arith.mulf %110, %112 : vector<8x512xf32>
    %c192 = arith.constant 192 : index
    %c0_41 = arith.constant 0 : index
    %114 = vector.load %arg5[%c192, %c0_41] : memref<272x512xf32, #tpu.memory_space<vmem>>, vector<8x512xf32>
    tpu.vector_store %arg5[%c192, %c0_41], %113 {strides = array<i32>} : memref<272x512xf32, #tpu.memory_space<vmem>>, vector<8x512xf32>,
    %115 = vector.extract_strided_slice %22 {offsets = [0, 0], sizes = [8, 512], strides = [1, 1]} : vector<20x512xf32> to vector<8x512xf32>
    %c2_i32 = arith.constant 2 : i32
    %116 = tpu.dynamic_rotate %115 by %c2_i32 dim 1 : vector<8x512xf32>, i32 -> vector<8x512xf32>
    %c15 = arith.constant 15 : index
    %c0_42 = arith.constant 0 : index
    %117 = vector.load %arg1[%c15, %c0_42] : memref<24x512xf32, #tpu.memory_space<vmem>>, vector<1x512xf32>
    %118 = vector.broadcast %117 : vector<1x512xf32> to vector<8x512xf32>
    %119 = arith.mulf %116, %118 : vector<8x512xf32>
    %c200 = arith.constant 200 : index
    %c0_43 = arith.constant 0 : index
    %120 = vector.load %arg5[%c200, %c0_43] : memref<272x512xf32, #tpu.memory_space<vmem>>, vector<8x512xf32>
    tpu.vector_store %arg5[%c200, %c0_43], %119 {strides = array<i32>} : memref<272x512xf32, #tpu.memory_space<vmem>>, vector<8x512xf32>,
    %121 = vector.extract_strided_slice %22 {offsets = [0, 0], sizes = [8, 512], strides = [1, 1]} : vector<20x512xf32> to vector<8x512xf32>
    %c510_i32 = arith.constant 510 : i32
    %122 = tpu.dynamic_rotate %121 by %c510_i32 dim 1 : vector<8x512xf32>, i32 -> vector<8x512xf32>
    %c16_44 = arith.constant 16 : index
    %c0_45 = arith.constant 0 : index
    %123 = vector.load %arg1[%c16_44, %c0_45] : memref<24x512xf32, #tpu.memory_space<vmem>>, vector<1x512xf32>
    %124 = vector.broadcast %123 : vector<1x512xf32> to vector<8x512xf32>
    %125 = arith.mulf %122, %124 : vector<8x512xf32>
    %c208 = arith.constant 208 : index
    %c0_46 = arith.constant 0 : index
    %126 = vector.load %arg5[%c208, %c0_46] : memref<272x512xf32, #tpu.memory_space<vmem>>, vector<8x512xf32>
    tpu.vector_store %arg5[%c208, %c0_46], %125 {strides = array<i32>} : memref<272x512xf32, #tpu.memory_space<vmem>>, vector<8x512xf32>,
    %127 = vector.extract_strided_slice %22 {offsets = [0, 0], sizes = [8, 512], strides = [1, 1]} : vector<20x512xf32> to vector<8x512xf32>
    %c498_i32 = arith.constant 498 : i32
    %128 = tpu.dynamic_rotate %127 by %c498_i32 dim 1 : vector<8x512xf32>, i32 -> vector<8x512xf32>
    %c17 = arith.constant 17 : index
    %c0_47 = arith.constant 0 : index
    %129 = vector.load %arg1[%c17, %c0_47] : memref<24x512xf32, #tpu.memory_space<vmem>>, vector<1x512xf32>
    %130 = vector.broadcast %129 : vector<1x512xf32> to vector<8x512xf32>
    %131 = arith.mulf %128, %130 : vector<8x512xf32>
    %c216 = arith.constant 216 : index
    %c0_48 = arith.constant 0 : index
    %132 = vector.load %arg5[%c216, %c0_48] : memref<272x512xf32, #tpu.memory_space<vmem>>, vector<8x512xf32>
    tpu.vector_store %arg5[%c216, %c0_48], %131 {strides = array<i32>} : memref<272x512xf32, #tpu.memory_space<vmem>>, vector<8x512xf32>,
    %133 = vector.extract_strided_slice %22 {offsets = [0, 0], sizes = [8, 512], strides = [1, 1]} : vector<20x512xf32> to vector<8x512xf32>
    %c494_i32 = arith.constant 494 : i32
    %134 = tpu.dynamic_rotate %133 by %c494_i32 dim 1 : vector<8x512xf32>, i32 -> vector<8x512xf32>
    %c18 = arith.constant 18 : index
    %c0_49 = arith.constant 0 : index
    %135 = vector.load %arg1[%c18, %c0_49] : memref<24x512xf32, #tpu.memory_space<vmem>>, vector<1x512xf32>
    %136 = vector.broadcast %135 : vector<1x512xf32> to vector<8x512xf32>
    %137 = arith.mulf %134, %136 : vector<8x512xf32>
    %c224 = arith.constant 224 : index
    %c0_50 = arith.constant 0 : index
    %138 = vector.load %arg5[%c224, %c0_50] : memref<272x512xf32, #tpu.memory_space<vmem>>, vector<8x512xf32>
    tpu.vector_store %arg5[%c224, %c0_50], %137 {strides = array<i32>} : memref<272x512xf32, #tpu.memory_space<vmem>>, vector<8x512xf32>,
    %139 = vector.extract_strided_slice %22 {offsets = [0, 0], sizes = [8, 512], strides = [1, 1]} : vector<20x512xf32> to vector<8x512xf32>
    %c482_i32 = arith.constant 482 : i32
    %140 = tpu.dynamic_rotate %139 by %c482_i32 dim 1 : vector<8x512xf32>, i32 -> vector<8x512xf32>
    %c19 = arith.constant 19 : index
    %c0_51 = arith.constant 0 : index
    %141 = vector.load %arg1[%c19, %c0_51] : memref<24x512xf32, #tpu.memory_space<vmem>>, vector<1x512xf32>
    %142 = vector.broadcast %141 : vector<1x512xf32> to vector<8x512xf32>
    %143 = arith.mulf %140, %142 : vector<8x512xf32>
    %c232 = arith.constant 232 : index
    %c0_52 = arith.constant 0 : index
    %144 = vector.load %arg5[%c232, %c0_52] : memref<272x512xf32, #tpu.memory_space<vmem>>, vector<8x512xf32>
    tpu.vector_store %arg5[%c232, %c0_52], %143 {strides = array<i32>} : memref<272x512xf32, #tpu.memory_space<vmem>>, vector<8x512xf32>,
    %145 = vector.extract_strided_slice %22 {offsets = [0, 0], sizes = [8, 512], strides = [1, 1]} : vector<20x512xf32> to vector<8x512xf32>
    %c481_i32 = arith.constant 481 : i32
    %146 = tpu.dynamic_rotate %145 by %c481_i32 dim 1 : vector<8x512xf32>, i32 -> vector<8x512xf32>
    %c20 = arith.constant 20 : index
    %c0_53 = arith.constant 0 : index
    %147 = vector.load %arg1[%c20, %c0_53] : memref<24x512xf32, #tpu.memory_space<vmem>>, vector<1x512xf32>
    %148 = vector.broadcast %147 : vector<1x512xf32> to vector<8x512xf32>
    %149 = arith.mulf %146, %148 : vector<8x512xf32>
    %c240 = arith.constant 240 : index
    %c0_54 = arith.constant 0 : index
    %150 = vector.load %arg5[%c240, %c0_54] : memref<272x512xf32, #tpu.memory_space<vmem>>, vector<8x512xf32>
    tpu.vector_store %arg5[%c240, %c0_54], %149 {strides = array<i32>} : memref<272x512xf32, #tpu.memory_space<vmem>>, vector<8x512xf32>,
    %151 = vector.extract_strided_slice %22 {offsets = [0, 0], sizes = [8, 512], strides = [1, 1]} : vector<20x512xf32> to vector<8x512xf32>
    %c480_i32 = arith.constant 480 : i32
    %152 = tpu.dynamic_rotate %151 by %c480_i32 dim 1 : vector<8x512xf32>, i32 -> vector<8x512xf32>
    %c21 = arith.constant 21 : index
    %c0_55 = arith.constant 0 : index
    %153 = vector.load %arg1[%c21, %c0_55] : memref<24x512xf32, #tpu.memory_space<vmem>>, vector<1x512xf32>
    %154 = vector.broadcast %153 : vector<1x512xf32> to vector<8x512xf32>
    %155 = arith.mulf %152, %154 : vector<8x512xf32>
    %c248 = arith.constant 248 : index
    %c0_56 = arith.constant 0 : index
    %156 = vector.load %arg5[%c248, %c0_56] : memref<272x512xf32, #tpu.memory_space<vmem>>, vector<8x512xf32>
    tpu.vector_store %arg5[%c248, %c0_56], %155 {strides = array<i32>} : memref<272x512xf32, #tpu.memory_space<vmem>>, vector<8x512xf32>,
    %157 = vector.extract_strided_slice %22 {offsets = [0, 0], sizes = [8, 512], strides = [1, 1]} : vector<20x512xf32> to vector<8x512xf32>
    %c479_i32 = arith.constant 479 : i32
    %158 = tpu.dynamic_rotate %157 by %c479_i32 dim 1 : vector<8x512xf32>, i32 -> vector<8x512xf32>
    %c22 = arith.constant 22 : index
    %c0_57 = arith.constant 0 : index
    %159 = vector.load %arg1[%c22, %c0_57] : memref<24x512xf32, #tpu.memory_space<vmem>>, vector<1x512xf32>
    %160 = vector.broadcast %159 : vector<1x512xf32> to vector<8x512xf32>
    %161 = arith.mulf %158, %160 : vector<8x512xf32>
    %c256 = arith.constant 256 : index
    %c0_58 = arith.constant 0 : index
    %162 = vector.load %arg5[%c256, %c0_58] : memref<272x512xf32, #tpu.memory_space<vmem>>, vector<8x512xf32>
    tpu.vector_store %arg5[%c256, %c0_58], %161 {strides = array<i32>} : memref<272x512xf32, #tpu.memory_space<vmem>>, vector<8x512xf32>,
    %163 = vector.extract_strided_slice %22 {offsets = [0, 0], sizes = [8, 512], strides = [1, 1]} : vector<20x512xf32> to vector<8x512xf32>
    %c478_i32 = arith.constant 478 : i32
    %164 = tpu.dynamic_rotate %163 by %c478_i32 dim 1 : vector<8x512xf32>, i32 -> vector<8x512xf32>
    %c23 = arith.constant 23 : index
    %c0_59 = arith.constant 0 : index
    %165 = vector.load %arg1[%c23, %c0_59] : memref<24x512xf32, #tpu.memory_space<vmem>>, vector<1x512xf32>
    %166 = vector.broadcast %165 : vector<1x512xf32> to vector<8x512xf32>
    %167 = arith.mulf %164, %166 : vector<8x512xf32>
    %c264 = arith.constant 264 : index
    %c0_60 = arith.constant 0 : index
    %168 = vector.load %arg5[%c264, %c0_60] : memref<272x512xf32, #tpu.memory_space<vmem>>, vector<8x512xf32>
    tpu.vector_store %arg5[%c264, %c0_60], %167 {strides = array<i32>} : memref<272x512xf32, #tpu.memory_space<vmem>>, vector<8x512xf32>,
    %c0_61 = arith.constant 0 : index
    %c0_62 = arith.constant 0 : index
    %169 = vector.load %arg3[%c0_61, %c0_62] : memref<16x272xf32, #tpu.memory_space<vmem>>, vector<16x272xf32>
    %c0_63 = arith.constant 0 : index
    %c0_64 = arith.constant 0 : index
    %170 = vector.load %arg5[%c0_63, %c0_64] : memref<272x512xf32, #tpu.memory_space<vmem>>, vector<272x512xf32>
    %cst_65 = arith.constant dense<0.000000e+00> : vector<16x512xf32>
    %171 = tpu.matmul %169, %170, %cst_65 {dimension_numbers = #tpu.dot_dimension_numbers<[1], [0], [0], [1], [0, 0, 1, 1], [], []>} : vector<16x272xf32>, vector<272x512xf32>, vector<16x512xf32> -> vector<16x512xf32>
    %cst_66 = arith.constant dense<0.000000e+00> : vector<16xf32>
    %172 = vector.multi_reduction <add>, %171, %cst_66 [1] : vector<16x512xf32> to vector<16xf32>
    %173 = vector.shape_cast %172 : vector<16xf32> to vector<16x1xf32>
    %174 = arith.mulf %171, %171 : vector<16x512xf32>
    %cst_67 = arith.constant dense<0.000000e+00> : vector<16xf32>
    %175 = vector.multi_reduction <add>, %174, %cst_67 [1] : vector<16x512xf32> to vector<16xf32>
    %176 = vector.shape_cast %175 : vector<16xf32> to vector<16x1xf32>
    %cst_68 = arith.constant 0.001953125 : f32
    %177 = vector.broadcast %cst_68 : f32 to vector<16x1xf32>
    %178 = arith.mulf %173, %177 : vector<16x1xf32>
    %cst_69 = arith.constant 0.001953125 : f32
    %179 = vector.broadcast %cst_69 : f32 to vector<16x1xf32>
    %180 = arith.mulf %176, %179 : vector<16x1xf32>
    %181 = arith.mulf %178, %178 : vector<16x1xf32>
    %182 = arith.subf %180, %181 : vector<16x1xf32>
    %183 = vector.broadcast %178 : vector<16x1xf32> to vector<16x512xf32>
    %184 = arith.subf %171, %183 : vector<16x512xf32>
    %cst_70 = arith.constant 9.99999974E-6 : f32
    %185 = vector.broadcast %cst_70 : f32 to vector<16x1xf32>
    %186 = arith.addf %182, %185 : vector<16x1xf32>
    %187 = math.rsqrt %186 : vector<16x1xf32>
    %188 = vector.broadcast %187 : vector<16x1xf32> to vector<16x512xf32>
    %189 = arith.mulf %184, %188 : vector<16x512xf32>
    %cst_71 = arith.constant 0.000000e+00 : f32
    %190 = vector.broadcast %cst_71 : f32 to vector<16x512xf32>
    %191 = arith.maximumf %189, %190 : vector<16x512xf32>
    %c0_72 = arith.constant 0 : index
    %c0_73 = arith.constant 0 : index
    %192 = vector.load %arg4[%c0_72, %c0_73] : memref<20x512xf32, #tpu.memory_space<vmem>>, vector<16x512xf32>
    tpu.vector_store %arg4[%c0_72, %c0_73], %191 {strides = array<i32>} : memref<20x512xf32, #tpu.memory_space<vmem>>, vector<16x512xf32>,
    %193 = vector.extract_strided_slice %22 {offsets = [16, 0], sizes = [4, 512], strides = [1, 1]} : vector<20x512xf32> to vector<4x512xf32>
    %c16_74 = arith.constant 16 : index
    %c0_75 = arith.constant 0 : index
    %194 = vector.load %arg4[%c16_74, %c0_75] : memref<20x512xf32, #tpu.memory_space<vmem>>, vector<4x512xf32>
    tpu.vector_store %arg4[%c16_74, %c0_75], %193 {strides = array<i32>} : memref<20x512xf32, #tpu.memory_space<vmem>>, vector<4x512xf32>,
    return
  }
}

</mosaic_0001>

<llo_original>
// kernel: _lambda_.1
$region0: #{_lambda_.1}
  #allocation0 [shape = 'u32[]', space=smem, size = 0x4, offset = 0x4, fixed_abs, tag = 'smem constant byte address 0x4 - core index']
  #allocation1 [shape = 'u32[144,128]{1,0:T(1,128)}', space=vmem, size = 0x12000, scoped, tag = 'internal scratch']
  #allocation2 [shape = 'f32[272,512]{1,0:T(8,128)}', space=vmem, size = 0x88000, scoped, tag = 'scratch operand']
  %s0 = inlined_call_operand.vmem [shape: f32[4,512], index: 0, kind: input, shape index: {}]
  %s1 = inlined_call_operand.vmem [shape: f32[24,512], index: 1, kind: input, shape index: {}]
  %s2 = inlined_call_operand.vmem [shape: f32[20,4], index: 2, kind: input, shape index: {}]
  %s3 = inlined_call_operand.vmem [shape: f32[16,272], index: 3, kind: input, shape index: {}]
  %s4 = inlined_call_operand.vmem [shape: f32[20,512], index: 4, kind: output, shape index: {}]
  %s5 = sld [smem:[#allocation0]]
  $region26: #{_lambda_.1} parent=0
    _
  %s7 = ssub.s32 1, %s5
  %s8 = scalar_select 0, %s7, %s5
  // Predicated region
  $region2: #{_lambda_.1} parent=0 // pred_check
    _
  $region3: #{_lambda_.1} parent=0 // pred_check_branch
    %10 = sbr.rel (0) target = $region5
  $region4: #{_lambda_.1} parent=0 // pred_region
    _
  $region5: #{_lambda_.1} parent=0 // pred_fallthru
    _
  // Predicated region
  $region6: #{_lambda_.1} parent=0 // pred_check
    _
  $region7: #{_lambda_.1} parent=0 // pred_check_branch
    %12 = sbr.rel (0) target = $region9
  $region8: #{_lambda_.1} parent=0 // pred_region
    _
  $region9: #{_lambda_.1} parent=0 // pred_fallthru
    _
  // Predicated region
  $region10: #{_lambda_.1} parent=0 // pred_check
    _
  $region11: #{_lambda_.1} parent=0 // pred_check_branch
    %14 = sbr.rel (0) target = $region13
  $region12: #{_lambda_.1} parent=0 // pred_region
    _
  $region13: #{_lambda_.1} parent=0 // pred_fallthru
    _
  // Predicated region
  $region14: #{_lambda_.1} parent=0 // pred_check
    _
  $region15: #{_lambda_.1} parent=0 // pred_check_branch
    %16 = sbr.rel (0) target = $region17
  $region16: #{_lambda_.1} parent=0 // pred_region
    _
  $region17: #{_lambda_.1} parent=0 // pred_fallthru
    _
  %v17 = vld [vmem:[%s2] sm:$0xff]
  %v18 = vld [vmem:[%s2 + $0x8] sm:$0xff]
  %v19 = vld [vmem:[%s2 + $0x10] sm:$0xf]
  %v20 = vld [vmem:[%s0] sm:$0xff]
  %v21 = vld [vmem:[%s0 + $0x8] sm:$0xff]
  %v24 = vcombine.high %v20, %v20
  %v25 = vcombine.high %v21, %v21
  %vm26 = vcmask 31744
  %v28 = vsel %vm26, %v17, 0
  %v31 = vsel %vm26, %v18, 0
  %v34 = vsel %vm26, %v19, 0
  %vm36 = vcmask 1043456
  %v37 = vsel %vm36, %v20, 0
  %v39 = vsel %vm36, %v24, 0
  %v41 = vsel %vm36, %v21, 0
  %v43 = vsel %vm36, %v25, 0
  %45 = vmatprep.subr.mxu0 %v39
  %46 = vmatpush1.msra.mxu0 %v37
  %47 = vmatprep.subr.mxu0 0.0
  %48 = vmatpush1.msra.mxu0 0.0
  %49 = vmatprep.subr.mxu0 0.0
  %50 = vmatpush1.msra.mxu0 0.0
  %51 = vmatprep.subr.mxu0 0.0
  %52 = vmatpush1.msra.mxu0 0.0
  %53 = vmatprep.subr.mxu0 0.0
  %54 = vmatpush1.msra.mxu0 0.0
  %55 = vmatprep.subr.mxu0 0.0
  %56 = vmatpush1.msra.mxu0 0.0
  %57 = vmatprep.subr.mxu0 0.0
  %58 = vmatpush1.msra.mxu0 0.0
  %59 = vmatprep.subr.mxu0 0.0
  %60 = vmatpush1.msra.mxu0 0.0
  %61 = vmatprep.subr.mxu0 0.0
  %62 = vmatpush1.msra.mxu0 0.0
  %63 = vmatprep.subr.mxu0 0.0
  %64 = vmatpush1.msra.mxu0 0.0
  %65 = vmatprep.subr.mxu0 0.0
  %66 = vmatpush1.msra.mxu0 0.0
  %67 = vmatprep.subr.mxu0 0.0
  %68 = vmatpush1.msra.mxu0 0.0
  %69 = vmatprep.subr.mxu0 0.0
  %70 = vmatpush1.msra.mxu0 0.0
  %71 = vmatprep.subr.mxu0 0.0
  %72 = vmatpush1.msra.mxu0 0.0
  %73 = vmatprep.subr.mxu0 0.0
  %74 = vmatpush1.msra.mxu0 0.0
  %75 = vmatprep.subr.mxu0 0.0
  %76 = vmatpush1.msra.mxu0 0.0
  %77 = vmatprep.subr.mxu0 0.0
  %78 = vmatpush1.msra.mxu0 0.0
  %79 = vmatprep.subr.mxu0 0.0
  %80 = vmatpush1.msra.mxu0 0.0
  %81 = vmatprep.subr.mxu0 0.0
  %82 = vmatpush1.msra.mxu0 0.0
  %83 = vmatprep.subr.mxu0 0.0
  %84 = vmatpush1.msra.mxu0 0.0
  %85 = vmatprep.subr.mxu0 0.0
  %86 = vmatpush1.msra.mxu0 0.0
  %87 = vmatprep.subr.mxu0 0.0
  %88 = vmatpush1.msra.mxu0 0.0
  %89 = vmatprep.subr.mxu0 0.0
  %90 = vmatpush1.msra.mxu0 0.0
  %91 = vmatprep.subr.mxu0 0.0
  %92 = vmatpush1.msra.mxu0 0.0
  %93 = vmatprep.subr.mxu0 0.0
  %94 = vmatpush1.msra.mxu0 0.0
  %95 = vmatprep.subr.mxu0 0.0
  %96 = vmatpush1.msra.mxu0 0.0
  %97 = vmatprep.subr.mxu0 0.0
  %98 = vmatpush1.msra.mxu0 0.0
  %99 = vmatprep.subr.mxu0 0.0
  %100 = vmatpush1.msra.mxu0 0.0
  %101 = vmatprep.subr.mxu0 0.0
  %102 = vmatpush1.msra.mxu0 0.0
  %103 = vmatprep.subr.mxu0 0.0
  %104 = vmatpush1.msra.mxu0 0.0
  %105 = vmatprep.subr.mxu0 0.0
  %106 = vmatpush1.msra.mxu0 0.0
  %107 = vmatprep.subr.mxu0 0.0
  %108 = vmatpush1.msra.mxu0 0.0
  %109 = vmatprep.mubr.f32.mxu0 0.0
  %110 = vmatmul.mubr.f32.gmra.mrb[0].mxu0 %v28
  %v111 = vpop.f32.mrb[0].mxu0
  %v112 = vadd.f32 0.0, %v111
  %v113 = vpop.f32.mrb[0].mxu0
  %v114 = vadd.f32 0.0, %v113
  %115 = vmatprep.mubr.f32.mxu0 0.0
  %116 = vmatmul.mubr.f32.gmra.mrb[0].mxu0 %v31
  %v117 = vpop.f32.mrb[0].mxu0
  %v118 = vadd.f32 0.0, %v117
  %v119 = vpop.f32.mrb[0].mxu0
  %v120 = vadd.f32 0.0, %v119
  %121 = vmatprep.mubr.f32.mxu0 0.0
  %122 = vmatmul.mubr.f32.gmra.mrb[0].mxu0 %v34
  %v123 = vpop.f32.mrb[0].mxu0
  %v124 = vadd.f32 0.0, %v123
  %v125 = vpop.f32.mrb[0].mxu0
  %v126 = vadd.f32 0.0, %v125
  %127 = vdwg.mxu0
  %128 = vmatprep.subr.mxu0 %v43
  %129 = vmatpush1.msra.mxu0 %v41
  %130 = vmatprep.subr.mxu0 0.0
  %131 = vmatpush1.msra.mxu0 0.0
  %132 = vmatprep.subr.mxu0 0.0
  %133 = vmatpush1.msra.mxu0 0.0
  %134 = vmatprep.subr.mxu0 0.0
  %135 = vmatpush1.msra.mxu0 0.0
  %136 = vmatprep.subr.mxu0 0.0
  %137 = vmatpush1.msra.mxu0 0.0
  %138 = vmatprep.subr.mxu0 0.0
  %139 = vmatpush1.msra.mxu0 0.0
  %140 = vmatprep.subr.mxu0 0.0
  %141 = vmatpush1.msra.mxu0 0.0
  %142 = vmatprep.subr.mxu0 0.0
  %143 = vmatpush1.msra.mxu0 0.0
  %144 = vmatprep.subr.mxu0 0.0
  %145 = vmatpush1.msra.mxu0 0.0
  %146 = vmatprep.subr.mxu0 0.0
  %147 = vmatpush1.msra.mxu0 0.0
  %148 = vmatprep.subr.mxu0 0.0
  %149 = vmatpush1.msra.mxu0 0.0
  %150 = vmatprep.subr.mxu0 0.0
  %151 = vmatpush1.msra.mxu0 0.0
  %152 = vmatprep.subr.mxu0 0.0
  %153 = vmatpush1.msra.mxu0 0.0
  %154 = vmatprep.subr.mxu0 0.0
  %155 = vmatpush1.msra.mxu0 0.0
  %156 = vmatprep.subr.mxu0 0.0
  %157 = vmatpush1.msra.mxu0 0.0
  %158 = vmatprep.subr.mxu0 0.0
  %159 = vmatpush1.msra.mxu0 0.0
  %160 = vmatprep.subr.mxu0 0.0
  %161 = vmatpush1.msra.mxu0 0.0
  %162 = vmatprep.subr.mxu0 0.0
  %163 = vmatpush1.msra.mxu0 0.0
  %164 = vmatprep.subr.mxu0 0.0
  %165 = vmatpush1.msra.mxu0 0.0
  %166 = vmatprep.subr.mxu0 0.0
  %167 = vmatpush1.msra.mxu0 0.0
  %168 = vmatprep.subr.mxu0 0.0
  %169 = vmatpush1.msra.mxu0 0.0
  %170 = vmatprep.subr.mxu0 0.0
  %171 = vmatpush1.msra.mxu0 0.0
  %172 = vmatprep.subr.mxu0 0.0
  %173 = vmatpush1.msra.mxu0 0.0
  %174 = vmatprep.subr.mxu0 0.0
  %175 = vmatpush1.msra.mxu0 0.0
  %176 = vmatprep.subr.mxu0 0.0
  %177 = vmatpush1.msra.mxu0 0.0
  %178 = vmatprep.subr.mxu0 0.0
  %179 = vmatpush1.msra.mxu0 0.0
  %180 = vmatprep.subr.mxu0 0.0
  %181 = vmatpush1.msra.mxu0 0.0
  %182 = vmatprep.subr.mxu0 0.0
  %183 = vmatpush1.msra.mxu0 0.0
  %184 = vmatprep.subr.mxu0 0.0
  %185 = vmatpush1.msra.mxu0 0.0
  %186 = vmatprep.subr.mxu0 0.0
  %187 = vmatpush1.msra.mxu0 0.0
  %188 = vmatprep.subr.mxu0 0.0
  %189 = vmatpush1.msra.mxu0 0.0
  %190 = vmatprep.subr.mxu0 0.0
  %191 = vmatpush1.msra.mxu0 0.0
  %192 = vmatprep.mubr.f32.mxu0 0.0
  %193 = vmatmul.mubr.f32.gmra.mrb[0].mxu0 %v28
  %v194 = vpop.f32.mrb[0].mxu0
  %v195 = vadd.f32 0.0, %v194
  %v196 = vpop.f32.mrb[0].mxu0
  %v197 = vadd.f32 0.0, %v196
  %198 = vmatprep.mubr.f32.mxu0 0.0
  %199 = vmatmul.mubr.f32.gmra.mrb[0].mxu0 %v31
  %v200 = vpop.f32.mrb[0].mxu0
  %v201 = vadd.f32 0.0, %v200
  %v202 = vpop.f32.mrb[0].mxu0
  %v203 = vadd.f32 0.0, %v202
  %204 = vmatprep.mubr.f32.mxu0 0.0
  %205 = vmatmul.mubr.f32.gmra.mrb[0].mxu0 %v34
  %v206 = vpop.f32.mrb[0].mxu0
  %v207 = vadd.f32 0.0, %v206
  %v208 = vpop.f32.mrb[0].mxu0
  %v209 = vadd.f32 0.0, %v208
  %210 = vdwg.mxu0
  %v211 = vadd.f32 %v112, %v114
  %v212 = vadd.f32 %v211, %v195
  %v213 = vadd.f32 %v212, %v197
  %214 = vadd.xlane.f32.xlu0 %v213
  %v215 = vpop.xlane.xlu0 %214
  %v216 = vadd.f32 %v118, %v120
  %v217 = vadd.f32 %v216, %v201
  %v218 = vadd.f32 %v217, %v203
  %219 = vadd.xlane.f32.xlu0 %v218
  %v220 = vpop.xlane.xlu0 %219
  %v221 = vsel %vm36, %v124, 0.0
  %v222 = vsel %vm36, %v126, 0.0
  %v223 = vadd.f32 %v221, %v222
  %v224 = vsel %vm36, %v207, 0.0
  %v225 = vadd.f32 %v223, %v224
  %v226 = vsel %vm36, %v209, 0.0
  %v227 = vadd.f32 %v225, %v226
  %228 = vadd.xlane.f32.xlu0 %v227
  %v229 = vpop.xlane.xlu0 %228
  %v230 = vmul.f32 %v112, %v112
  %v231 = vmul.f32 %v114, %v114
  %v232 = vmul.f32 %v195, %v195
  %v233 = vmul.f32 %v197, %v197
  %v234 = vmul.f32 %v118, %v118
  %v235 = vmul.f32 %v120, %v120
  %v236 = vmul.f32 %v201, %v201
  %v237 = vmul.f32 %v203, %v203
  %v238 = vmul.f32 %v124, %v124
  %v239 = vmul.f32 %v126, %v126
  %v240 = vmul.f32 %v207, %v207
  %v241 = vmul.f32 %v209, %v209
  %v242 = vadd.f32 %v230, %v231
  %v243 = vadd.f32 %v242, %v232
  %v244 = vadd.f32 %v243, %v233
  %245 = vadd.xlane.f32.xlu0 %v244
  %v246 = vpop.xlane.xlu0 %245
  %v247 = vadd.f32 %v234, %v235
  %v248 = vadd.f32 %v247, %v236
  %v249 = vadd.f32 %v248, %v237
  %250 = vadd.xlane.f32.xlu0 %v249
  %v251 = vpop.xlane.xlu0 %250
  %v252 = vsel %vm36, %v238, 0.0
  %v253 = vsel %vm36, %v239, 0.0
  %v254 = vadd.f32 %v252, %v253
  %v255 = vsel %vm36, %v240, 0.0
  %v256 = vadd.f32 %v254, %v255
  %v257 = vsel %vm36, %v241, 0.0
  %v258 = vadd.f32 %v256, %v257
  %259 = vadd.xlane.f32.xlu0 %v258
  %v260 = vpop.xlane.xlu0 %259
  %v261 = vmul.f32 %v215, 0.001953125
  %v262 = vmul.f32 %v220, 0.001953125
  %v263 = vmul.f32 %v229, 0.001953125
  %v264 = vmul.f32 %v246, 0.001953125
  %v265 = vmul.f32 %v251, 0.001953125
  %v266 = vmul.f32 %v260, 0.001953125
  %v267 = vmul.f32 %v261, %v261
  %v268 = vmul.f32 %v262, %v262
  %v269 = vmul.f32 %v263, %v263
  %v270 = vsub.f32 %v264, %v267
  %v271 = vsub.f32 %v265, %v268
  %v272 = vsub.f32 %v266, %v269
  %v273 = vsub.f32 %v112, %v261
  %v274 = vsub.f32 %v114, %v261
  %v275 = vsub.f32 %v195, %v261
  %v276 = vsub.f32 %v197, %v261
  %v277 = vsub.f32 %v118, %v262
  %v278 = vsub.f32 %v120, %v262
  %v279 = vsub.f32 %v201, %v262
  %v280 = vsub.f32 %v203, %v262
  %v281 = vsub.f32 %v124, %v263
  %v282 = vsub.f32 %v126, %v263
  %v283 = vsub.f32 %v207, %v263
  %v284 = vsub.f32 %v209, %v263
  %v285 = vadd.f32 %v270, 1e-05
  %v286 = vadd.f32 %v271, 1e-05
  %v287 = vadd.f32 %v272, 1e-05
  %v288 = vrsqrt.pop %v285
  %v289 = vrsqrt.pop %v286
  %v290 = vrsqrt.pop %v287
  %v291 = vmul.f32 %v273, %v288
  %v292 = vmul.f32 %v274, %v288
  %v293 = vmul.f32 %v275, %v288
  %v294 = vmul.f32 %v276, %v288
  %v295 = vmul.f32 %v277, %v289
  %v296 = vmul.f32 %v278, %v289
  %v297 = vmul.f32 %v279, %v289
  %v298 = vmul.f32 %v280, %v289
  %v299 = vmul.f32 %v281, %v290
  %v300 = vmul.f32 %v282, %v290
  %v301 = vmul.f32 %v283, %v290
  %v302 = vmul.f32 %v284, %v290
  %v303 = vmax.f32 %v291, 0.0
  %v304 = vmax.f32 %v292, 0.0
  %v305 = vmax.f32 %v293, 0.0
  %v306 = vmax.f32 %v294, 0.0
  %v307 = vmax.f32 %v295, 0.0
  %v308 = vmax.f32 %v296, 0.0
  %v309 = vmax.f32 %v297, 0.0
  %v310 = vmax.f32 %v298, 0.0
  %v311 = vmax.f32 %v299, 0.0
  %v312 = vmax.f32 %v300, 0.0
  %v313 = vmax.f32 %v301, 0.0
  %v314 = vmax.f32 %v302, 0.0
  %315 = vrot.lane.b32.xlu0 %v303, 17
  %v316 = vpop.permute.xlu0 %315
  %317 = vrot.lane.b32.xlu0 %v307, 17
  %v318 = vpop.permute.xlu0 %317
  %319 = vrot.lane.b32.xlu0 %v304, 17
  %v320 = vpop.permute.xlu0 %319
  %321 = vrot.lane.b32.xlu0 %v308, 17
  %v322 = vpop.permute.xlu0 %321
  %323 = vrot.lane.b32.xlu0 %v305, 17
  %v324 = vpop.permute.xlu0 %323
  %325 = vrot.lane.b32.xlu0 %v309, 17
  %v326 = vpop.permute.xlu0 %325
  %327 = vrot.lane.b32.xlu0 %v306, 17
  %v328 = vpop.permute.xlu0 %327
  %329 = vrot.lane.b32.xlu0 %v310, 17
  %v330 = vpop.permute.xlu0 %329
  %v331 = vlaneseq
  %v332 = vand.u32 %v331, 127
  %vm333 = vcmp.lt.s32.totalorder %v332, 17
  %v334 = vsel %vm333, %v324, %v328
  %v335 = vsel %vm333, %v326, %v330
  %v336 = vsel %vm333, %v320, %v324
  %v337 = vsel %vm333, %v322, %v326
  %v338 = vsel %vm333, %v316, %v320
  %v339 = vsel %vm333, %v318, %v322
  %v340 = vsel %vm333, %v328, %v316
  %v341 = vsel %vm333, %v330, %v318
  %v342 = vld [vmem:[%s1] ss:$8 sm:$0xf]
  %v344 = vlaneseq
  %v345 = vshrl.u32 %v344, 7
  %v346 = vsub.s32 0, %v345
  %v347 = vrot.slane %v342, %v346
  %v348 = vlaneseq
  %v349 = vshrl.u32 %v348, 7
  %v350 = vsub.s32 1, %v349
  %v351 = vrot.slane %v342, %v350
  %v352 = vlaneseq
  %v353 = vshrl.u32 %v352, 7
  %v354 = vsub.s32 2, %v353
  %v355 = vrot.slane %v342, %v354
  %v356 = vlaneseq
  %v357 = vshrl.u32 %v356, 7
  %v358 = vsub.s32 3, %v357
  %v359 = vrot.slane %v342, %v358
  %v364 = vmul.f32 %v340, %v347
  %v365 = vmul.f32 %v338, %v351
  %v366 = vmul.f32 %v336, %v355
  %v367 = vmul.f32 %v334, %v359
  %v368 = vmul.f32 %v341, %v347
  %v369 = vmul.f32 %v339, %v351
  %v370 = vmul.f32 %v337, %v355
  %v371 = vmul.f32 %v335, %v359
  %372 = vst [vmem:[#allocation2] sm:$0xff] %v364
  %373 = vst [vmem:[#allocation2 + $0x8] sm:$0xff] %v365
  %374 = vst [vmem:[#allocation2 + $0x10] sm:$0xff] %v366
  %375 = vst [vmem:[#allocation2 + $0x18] sm:$0xff] %v367
  %376 = vst [vmem:[#allocation2 + $0x20] sm:$0xff] %v368
  %377 = vst [vmem:[#allocation2 + $0x28] sm:$0xff] %v369
  %378 = vst [vmem:[#allocation2 + $0x30] sm:$0xff] %v370
  %379 = vst [vmem:[#allocation2 + $0x38] sm:$0xff] %v371
  %380 = vrot.lane.b32.xlu0 %v303, 16
  %v381 = vpop.permute.xlu0 %380
  %382 = vrot.lane.b32.xlu0 %v307, 16
  %v383 = vpop.permute.xlu0 %382
  %384 = vrot.lane.b32.xlu0 %v304, 16
  %v385 = vpop.permute.xlu0 %384
  %386 = vrot.lane.b32.xlu0 %v308, 16
  %v387 = vpop.permute.xlu0 %386
  %388 = vrot.lane.b32.xlu0 %v305, 16
  %v389 = vpop.permute.xlu0 %388
  %390 = vrot.lane.b32.xlu0 %v309, 16
  %v391 = vpop.permute.xlu0 %390
  %392 = vrot.lane.b32.xlu0 %v306, 16
  %v393 = vpop.permute.xlu0 %392
  %394 = vrot.lane.b32.xlu0 %v310, 16
  %v395 = vpop.permute.xlu0 %394
  %vm396 = vcmp.lt.s32.totalorder %v332, 16
  %v397 = vsel %vm396, %v389, %v393
  %v398 = vsel %vm396, %v391, %v395
  %v399 = vsel %vm396, %v385, %v389
  %v400 = vsel %vm396, %v387, %v391
  %v401 = vsel %vm396, %v381, %v385
  %v402 = vsel %vm396, %v383, %v387
  %v403 = vsel %vm396, %v393, %v381
  %v404 = vsel %vm396, %v395, %v383
  %s405 = scalar_lea.vmem %s1, 1
  %v406 = vld [vmem:[%s405] ss:$8 sm:$0xf]
  %v408 = vlaneseq
  %v409 = vshrl.u32 %v408, 7
  %v410 = vsub.s32 0, %v409
  %v411 = vrot.slane %v406, %v410
  %v412 = vlaneseq
  %v413 = vshrl.u32 %v412, 7
  %v414 = vsub.s32 1, %v413
  %v415 = vrot.slane %v406, %v414
  %v416 = vlaneseq
  %v417 = vshrl.u32 %v416, 7
  %v418 = vsub.s32 2, %v417
  %v419 = vrot.slane %v406, %v418
  %v420 = vlaneseq
  %v421 = vshrl.u32 %v420, 7
  %v422 = vsub.s32 3, %v421
  %v423 = vrot.slane %v406, %v422
  %v428 = vmul.f32 %v403, %v411
  %v429 = vmul.f32 %v401, %v415
  %v430 = vmul.f32 %v399, %v419
  %v431 = vmul.f32 %v397, %v423
  %v432 = vmul.f32 %v404, %v411
  %v433 = vmul.f32 %v402, %v415
  %v434 = vmul.f32 %v400, %v419
  %v435 = vmul.f32 %v398, %v423
  %436 = vst [vmem:[#allocation2 + $0x40] sm:$0xff] %v428
  %437 = vst [vmem:[#allocation2 + $0x48] sm:$0xff] %v429
  %438 = vst [vmem:[#allocation2 + $0x50] sm:$0xff] %v430
  %439 = vst [vmem:[#allocation2 + $0x58] sm:$0xff] %v431
  %440 = vst [vmem:[#allocation2 + $0x60] sm:$0xff] %v432
  %441 = vst [vmem:[#allocation2 + $0x68] sm:$0xff] %v433
  %442 = vst [vmem:[#allocation2 + $0x70] sm:$0xff] %v434
  %443 = vst [vmem:[#allocation2 + $0x78] sm:$0xff] %v435
  %444 = vrot.lane.b32.xlu0 %v303, 15
  %v445 = vpop.permute.xlu0 %444
  %446 = vrot.lane.b32.xlu0 %v307, 15
  %v447 = vpop.permute.xlu0 %446
  %448 = vrot.lane.b32.xlu0 %v304, 15
  %v449 = vpop.permute.xlu0 %448
  %450 = vrot.lane.b32.xlu0 %v308, 15
  %v451 = vpop.permute.xlu0 %450
  %452 = vrot.lane.b32.xlu0 %v305, 15
  %v453 = vpop.permute.xlu0 %452
  %454 = vrot.lane.b32.xlu0 %v309, 15
  %v455 = vpop.permute.xlu0 %454
  %456 = vrot.lane.b32.xlu0 %v306, 15
  %v457 = vpop.permute.xlu0 %456
  %458 = vrot.lane.b32.xlu0 %v310, 15
  %v459 = vpop.permute.xlu0 %458
  %vm460 = vcmp.lt.s32.totalorder %v332, 15
  %v461 = vsel %vm460, %v453, %v457
  %v462 = vsel %vm460, %v455, %v459
  %v463 = vsel %vm460, %v449, %v453
  %v464 = vsel %vm460, %v451, %v455
  %v465 = vsel %vm460, %v445, %v449
  %v466 = vsel %vm460, %v447, %v451
  %v467 = vsel %vm460, %v457, %v445
  %v468 = vsel %vm460, %v459, %v447
  %s469 = scalar_lea.vmem %s1, 2
  %v470 = vld [vmem:[%s469] ss:$8 sm:$0xf]
  %v472 = vlaneseq
  %v473 = vshrl.u32 %v472, 7
  %v474 = vsub.s32 0, %v473
  %v475 = vrot.slane %v470, %v474
  %v476 = vlaneseq
  %v477 = vshrl.u32 %v476, 7
  %v478 = vsub.s32 1, %v477
  %v479 = vrot.slane %v470, %v478
  %v480 = vlaneseq
  %v481 = vshrl.u32 %v480, 7
  %v482 = vsub.s32 2, %v481
  %v483 = vrot.slane %v470, %v482
  %v484 = vlaneseq
  %v485 = vshrl.u32 %v484, 7
  %v486 = vsub.s32 3, %v485
  %v487 = vrot.slane %v470, %v486
  %v492 = vmul.f32 %v467, %v475
  %v493 = vmul.f32 %v465, %v479
  %v494 = vmul.f32 %v463, %v483
  %v495 = vmul.f32 %v461, %v487
  %v496 = vmul.f32 %v468, %v475
  %v497 = vmul.f32 %v466, %v479
  %v498 = vmul.f32 %v464, %v483
  %v499 = vmul.f32 %v462, %v487
  %500 = vst [vmem:[#allocation2 + $0x80] sm:$0xff] %v492
  %501 = vst [vmem:[#allocation2 + $0x88] sm:$0xff] %v493
  %502 = vst [vmem:[#allocation2 + $0x90] sm:$0xff] %v494
  %503 = vst [vmem:[#allocation2 + $0x98] sm:$0xff] %v495
  %504 = vst [vmem:[#allocation2 + $0xa0] sm:$0xff] %v496
  %505 = vst [vmem:[#allocation2 + $0xa8] sm:$0xff] %v497
  %506 = vst [vmem:[#allocation2 + $0xb0] sm:$0xff] %v498
  %507 = vst [vmem:[#allocation2 + $0xb8] sm:$0xff] %v499
  %508 = vrot.lane.b32.xlu0 %v303, 1
  %v509 = vpop.permute.xlu0 %508
  %510 = vrot.lane.b32.xlu0 %v307, 1
  %v511 = vpop.permute.xlu0 %510
  %512 = vrot.lane.b32.xlu0 %v304, 1
  %v513 = vpop.permute.xlu0 %512
  %514 = vrot.lane.b32.xlu0 %v308, 1
  %v515 = vpop.permute.xlu0 %514
  %516 = vrot.lane.b32.xlu0 %v305, 1
  %v517 = vpop.permute.xlu0 %516
  %518 = vrot.lane.b32.xlu0 %v309, 1
  %v519 = vpop.permute.xlu0 %518
  %520 = vrot.lane.b32.xlu0 %v306, 1
  %v521 = vpop.permute.xlu0 %520
  %522 = vrot.lane.b32.xlu0 %v310, 1
  %v523 = vpop.permute.xlu0 %522
  %vm524 = vcmp.lt.s32.totalorder %v332, 1
  %v525 = vsel %vm524, %v517, %v521
  %v526 = vsel %vm524, %v519, %v523
  %v527 = vsel %vm524, %v513, %v517
  %v528 = vsel %vm524, %v515, %v519
  %v529 = vsel %vm524, %v509, %v513
  %v530 = vsel %vm524, %v511, %v515
  %v531 = vsel %vm524, %v521, %v509
  %v532 = vsel %vm524, %v523, %v511
  %s533 = scalar_lea.vmem %s1, 3
  %v534 = vld [vmem:[%s533] ss:$8 sm:$0xf]
  %v536 = vlaneseq
  %v537 = vshrl.u32 %v536, 7
  %v538 = vsub.s32 0, %v537
  %v539 = vrot.slane %v534, %v538
  %v540 = vlaneseq
  %v541 = vshrl.u32 %v540, 7
  %v542 = vsub.s32 1, %v541
  %v543 = vrot.slane %v534, %v542
  %v544 = vlaneseq
  %v545 = vshrl.u32 %v544, 7
  %v546 = vsub.s32 2, %v545
  %v547 = vrot.slane %v534, %v546
  %v548 = vlaneseq
  %v549 = vshrl.u32 %v548, 7
  %v550 = vsub.s32 3, %v549
  %v551 = vrot.slane %v534, %v550
  %v556 = vmul.f32 %v531, %v539
  %v557 = vmul.f32 %v529, %v543
  %v558 = vmul.f32 %v527, %v547
  %v559 = vmul.f32 %v525, %v551
  %v560 = vmul.f32 %v532, %v539
  %v561 = vmul.f32 %v530, %v543
  %v562 = vmul.f32 %v528, %v547
  %v563 = vmul.f32 %v526, %v551
  %564 = vst [vmem:[#allocation2 + $0xc0] sm:$0xff] %v556
  %565 = vst [vmem:[#allocation2 + $0xc8] sm:$0xff] %v557
  %566 = vst [vmem:[#allocation2 + $0xd0] sm:$0xff] %v558
  %567 = vst [vmem:[#allocation2 + $0xd8] sm:$0xff] %v559
  %568 = vst [vmem:[#allocation2 + $0xe0] sm:$0xff] %v560
  %569 = vst [vmem:[#allocation2 + $0xe8] sm:$0xff] %v561
  %570 = vst [vmem:[#allocation2 + $0xf0] sm:$0xff] %v562
  %571 = vst [vmem:[#allocation2 + $0xf8] sm:$0xff] %v563
  %572 = vst [vmem:[#allocation2 + $0x100] sm:$0xff] %v303
  %573 = vst [vmem:[#allocation2 + $0x108] sm:$0xff] %v304
  %574 = vst [vmem:[#allocation2 + $0x110] sm:$0xff] %v305
  %575 = vst [vmem:[#allocation2 + $0x118] sm:$0xff] %v306
  %576 = vst [vmem:[#allocation2 + $0x120] sm:$0xff] %v307
  %577 = vst [vmem:[#allocation2 + $0x128] sm:$0xff] %v308
  %578 = vst [vmem:[#allocation2 + $0x130] sm:$0xff] %v309
  %579 = vst [vmem:[#allocation2 + $0x138] sm:$0xff] %v310
  %580 = vrot.lane.b32.xlu0 %v303, 127
  %v581 = vpop.permute.xlu0 %580
  %582 = vrot.lane.b32.xlu0 %v307, 127
  %v583 = vpop.permute.xlu0 %582
  %584 = vrot.lane.b32.xlu0 %v304, 127
  %v585 = vpop.permute.xlu0 %584
  %586 = vrot.lane.b32.xlu0 %v308, 127
  %v587 = vpop.permute.xlu0 %586
  %588 = vrot.lane.b32.xlu0 %v305, 127
  %v589 = vpop.permute.xlu0 %588
  %590 = vrot.lane.b32.xlu0 %v309, 127
  %v591 = vpop.permute.xlu0 %590
  %592 = vrot.lane.b32.xlu0 %v306, 127
  %v593 = vpop.permute.xlu0 %592
  %594 = vrot.lane.b32.xlu0 %v310, 127
  %v595 = vpop.permute.xlu0 %594
  %vm596 = vcmp.lt.s32.totalorder %v332, 127
  %v597 = vsel %vm596, %v589, %v593
  %v598 = vsel %vm596, %v591, %v595
  %v599 = vsel %vm596, %v585, %v589
  %v600 = vsel %vm596, %v587, %v591
  %v601 = vsel %vm596, %v581, %v585
  %v602 = vsel %vm596, %v583, %v587
  %v603 = vsel %vm596, %v593, %v581
  %v604 = vsel %vm596, %v595, %v583
  %s605 = scalar_lea.vmem %s1, 4
  %v606 = vld [vmem:[%s605] ss:$8 sm:$0xf]
  %v608 = vlaneseq
  %v609 = vshrl.u32 %v608, 7
  %v610 = vsub.s32 0, %v609
  %v611 = vrot.slane %v606, %v610
  %v612 = vlaneseq
  %v613 = vshrl.u32 %v612, 7
  %v614 = vsub.s32 1, %v613
  %v615 = vrot.slane %v606, %v614
  %v616 = vlaneseq
  %v617 = vshrl.u32 %v616, 7
  %v618 = vsub.s32 2, %v617
  %v619 = vrot.slane %v606, %v618
  %v620 = vlaneseq
  %v621 = vshrl.u32 %v620, 7
  %v622 = vsub.s32 3, %v621
  %v623 = vrot.slane %v606, %v622
  %v628 = vmul.f32 %v601, %v611
  %v629 = vmul.f32 %v599, %v615
  %v630 = vmul.f32 %v597, %v619
  %v631 = vmul.f32 %v603, %v623
  %v632 = vmul.f32 %v602, %v611
  %v633 = vmul.f32 %v600, %v615
  %v634 = vmul.f32 %v598, %v619
  %v635 = vmul.f32 %v604, %v623
  %636 = vst [vmem:[#allocation2 + $0x140] sm:$0xff] %v628
  %637 = vst [vmem:[#allocation2 + $0x148] sm:$0xff] %v629
  %638 = vst [vmem:[#allocation2 + $0x150] sm:$0xff] %v630
  %639 = vst [vmem:[#allocation2 + $0x158] sm:$0xff] %v631
  %640 = vst [vmem:[#allocation2 + $0x160] sm:$0xff] %v632
  %641 = vst [vmem:[#allocation2 + $0x168] sm:$0xff] %v633
  %642 = vst [vmem:[#allocation2 + $0x170] sm:$0xff] %v634
  %643 = vst [vmem:[#allocation2 + $0x178] sm:$0xff] %v635
  %644 = vrot.lane.b32.xlu0 %v303, 113
  %v645 = vpop.permute.xlu0 %644
  %646 = vrot.lane.b32.xlu0 %v307, 113
  %v647 = vpop.permute.xlu0 %646
  %648 = vrot.lane.b32.xlu0 %v304, 113
  %v649 = vpop.permute.xlu0 %648
  %650 = vrot.lane.b32.xlu0 %v308, 113
  %v651 = vpop.permute.xlu0 %650
  %652 = vrot.lane.b32.xlu0 %v305, 113
  %v653 = vpop.permute.xlu0 %652
  %654 = vrot.lane.b32.xlu0 %v309, 113
  %v655 = vpop.permute.xlu0 %654
  %656 = vrot.lane.b32.xlu0 %v306, 113
  %v657 = vpop.permute.xlu0 %656
  %658 = vrot.lane.b32.xlu0 %v310, 113
  %v659 = vpop.permute.xlu0 %658
  %vm660 = vcmp.lt.s32.totalorder %v332, 113
  %v661 = vsel %vm660, %v653, %v657
  %v662 = vsel %vm660, %v655, %v659
  %v663 = vsel %vm660, %v649, %v653
  %v664 = vsel %vm660, %v651, %v655
  %v665 = vsel %vm660, %v645, %v649
  %v666 = vsel %vm660, %v647, %v651
  %v667 = vsel %vm660, %v657, %v645
  %v668 = vsel %vm660, %v659, %v647
  %s669 = scalar_lea.vmem %s1, 5
  %v670 = vld [vmem:[%s669] ss:$8 sm:$0xf]
  %v672 = vlaneseq
  %v673 = vshrl.u32 %v672, 7
  %v674 = vsub.s32 0, %v673
  %v675 = vrot.slane %v670, %v674
  %v676 = vlaneseq
  %v677 = vshrl.u32 %v676, 7
  %v678 = vsub.s32 1, %v677
  %v679 = vrot.slane %v670, %v678
  %v680 = vlaneseq
  %v681 = vshrl.u32 %v680, 7
  %v682 = vsub.s32 2, %v681
  %v683 = vrot.slane %v670, %v682
  %v684 = vlaneseq
  %v685 = vshrl.u32 %v684, 7
  %v686 = vsub.s32 3, %v685
  %v687 = vrot.slane %v670, %v686
  %v692 = vmul.f32 %v665, %v675
  %v693 = vmul.f32 %v663, %v679
  %v694 = vmul.f32 %v661, %v683
  %v695 = vmul.f32 %v667, %v687
  %v696 = vmul.f32 %v666, %v675
  %v697 = vmul.f32 %v664, %v679
  %v698 = vmul.f32 %v662, %v683
  %v699 = vmul.f32 %v668, %v687
  %700 = vst [vmem:[#allocation2 + $0x180] sm:$0xff] %v692
  %701 = vst [vmem:[#allocation2 + $0x188] sm:$0xff] %v693
  %702 = vst [vmem:[#allocation2 + $0x190] sm:$0xff] %v694
  %703 = vst [vmem:[#allocation2 + $0x198] sm:$0xff] %v695
  %704 = vst [vmem:[#allocation2 + $0x1a0] sm:$0xff] %v696
  %705 = vst [vmem:[#allocation2 + $0x1a8] sm:$0xff] %v697
  %706 = vst [vmem:[#allocation2 + $0x1b0] sm:$0xff] %v698
  %707 = vst [vmem:[#allocation2 + $0x1b8] sm:$0xff] %v699
  %708 = vrot.lane.b32.xlu0 %v303, 112
  %v709 = vpop.permute.xlu0 %708
  %710 = vrot.lane.b32.xlu0 %v307, 112
  %v711 = vpop.permute.xlu0 %710
  %712 = vrot.lane.b32.xlu0 %v304, 112
  %v713 = vpop.permute.xlu0 %712
  %714 = vrot.lane.b32.xlu0 %v308, 112
  %v715 = vpop.permute.xlu0 %714
  %716 = vrot.lane.b32.xlu0 %v305, 112
  %v717 = vpop.permute.xlu0 %716
  %718 = vrot.lane.b32.xlu0 %v309, 112
  %v719 = vpop.permute.xlu0 %718
  %720 = vrot.lane.b32.xlu0 %v306, 112
  %v721 = vpop.permute.xlu0 %720
  %722 = vrot.lane.b32.xlu0 %v310, 112
  %v723 = vpop.permute.xlu0 %722
  %vm724 = vcmp.lt.s32.totalorder %v332, 112
  %v725 = vsel %vm724, %v717, %v721
  %v726 = vsel %vm724, %v719, %v723
  %v727 = vsel %vm724, %v713, %v717
  %v728 = vsel %vm724, %v715, %v719
  %v729 = vsel %vm724, %v709, %v713
  %v730 = vsel %vm724, %v711, %v715
  %v731 = vsel %vm724, %v721, %v709
  %v732 = vsel %vm724, %v723, %v711
  %s733 = scalar_lea.vmem %s1, 6
  %v734 = vld [vmem:[%s733] ss:$8 sm:$0xf]
  %v736 = vlaneseq
  %v737 = vshrl.u32 %v736, 7
  %v738 = vsub.s32 0, %v737
  %v739 = vrot.slane %v734, %v738
  %v740 = vlaneseq
  %v741 = vshrl.u32 %v740, 7
  %v742 = vsub.s32 1, %v741
  %v743 = vrot.slane %v734, %v742
  %v744 = vlaneseq
  %v745 = vshrl.u32 %v744, 7
  %v746 = vsub.s32 2, %v745
  %v747 = vrot.slane %v734, %v746
  %v748 = vlaneseq
  %v749 = vshrl.u32 %v748, 7
  %v750 = vsub.s32 3, %v749
  %v751 = vrot.slane %v734, %v750
  %v756 = vmul.f32 %v729, %v739
  %v757 = vmul.f32 %v727, %v743
  %v758 = vmul.f32 %v725, %v747
  %v759 = vmul.f32 %v731, %v751
  %v760 = vmul.f32 %v730, %v739
  %v761 = vmul.f32 %v728, %v743
  %v762 = vmul.f32 %v726, %v747
  %v763 = vmul.f32 %v732, %v751
  %764 = vst [vmem:[#allocation2 + $0x1c0] sm:$0xff] %v756
  %765 = vst [vmem:[#allocation2 + $0x1c8] sm:$0xff] %v757
  %766 = vst [vmem:[#allocation2 + $0x1d0] sm:$0xff] %v758
  %767 = vst [vmem:[#allocation2 + $0x1d8] sm:$0xff] %v759
  %768 = vst [vmem:[#allocation2 + $0x1e0] sm:$0xff] %v760
  %769 = vst [vmem:[#allocation2 + $0x1e8] sm:$0xff] %v761
  %770 = vst [vmem:[#allocation2 + $0x1f0] sm:$0xff] %v762
  %771 = vst [vmem:[#allocation2 + $0x1f8] sm:$0xff] %v763
  %772 = vrot.lane.b32.xlu0 %v303, 111
  %v773 = vpop.permute.xlu0 %772
  %774 = vrot.lane.b32.xlu0 %v307, 111
  %v775 = vpop.permute.xlu0 %774
  %776 = vrot.lane.b32.xlu0 %v304, 111
  %v777 = vpop.permute.xlu0 %776
  %778 = vrot.lane.b32.xlu0 %v308, 111
  %v779 = vpop.permute.xlu0 %778
  %780 = vrot.lane.b32.xlu0 %v305, 111
  %v781 = vpop.permute.xlu0 %780
  %782 = vrot.lane.b32.xlu0 %v309, 111
  %v783 = vpop.permute.xlu0 %782
  %784 = vrot.lane.b32.xlu0 %v306, 111
  %v785 = vpop.permute.xlu0 %784
  %786 = vrot.lane.b32.xlu0 %v310, 111
  %v787 = vpop.permute.xlu0 %786
  %vm788 = vcmp.lt.s32.totalorder %v332, 111
  %v789 = vsel %vm788, %v781, %v785
  %v790 = vsel %vm788, %v783, %v787
  %v791 = vsel %vm788, %v777, %v781
  %v792 = vsel %vm788, %v779, %v783
  %v793 = vsel %vm788, %v773, %v777
  %v794 = vsel %vm788, %v775, %v779
  %v795 = vsel %vm788, %v785, %v773
  %v796 = vsel %vm788, %v787, %v775
  %s797 = scalar_lea.vmem %s1, 7
  %v798 = vld [vmem:[%s797] ss:$8 sm:$0xf]
  %v800 = vlaneseq
  %v801 = vshrl.u32 %v800, 7
  %v802 = vsub.s32 0, %v801
  %v803 = vrot.slane %v798, %v802
  %v804 = vlaneseq
  %v805 = vshrl.u32 %v804, 7
  %v806 = vsub.s32 1, %v805
  %v807 = vrot.slane %v798, %v806
  %v808 = vlaneseq
  %v809 = vshrl.u32 %v808, 7
  %v810 = vsub.s32 2, %v809
  %v811 = vrot.slane %v798, %v810
  %v812 = vlaneseq
  %v813 = vshrl.u32 %v812, 7
  %v814 = vsub.s32 3, %v813
  %v815 = vrot.slane %v798, %v814
  %v820 = vmul.f32 %v793, %v803
  %v821 = vmul.f32 %v791, %v807
  %v822 = vmul.f32 %v789, %v811
  %v823 = vmul.f32 %v795, %v815
  %v824 = vmul.f32 %v794, %v803
  %v825 = vmul.f32 %v792, %v807
  %v826 = vmul.f32 %v790, %v811
  %v827 = vmul.f32 %v796, %v815
  %828 = vst [vmem:[#allocation2 + $0x200] sm:$0xff] %v820
  %829 = vst [vmem:[#allocation2 + $0x208] sm:$0xff] %v821
  %830 = vst [vmem:[#allocation2 + $0x210] sm:$0xff] %v822
  %831 = vst [vmem:[#allocation2 + $0x218] sm:$0xff] %v823
  %832 = vst [vmem:[#allocation2 + $0x220] sm:$0xff] %v824
  %833 = vst [vmem:[#allocation2 + $0x228] sm:$0xff] %v825
  %834 = vst [vmem:[#allocation2 + $0x230] sm:$0xff] %v826
  %835 = vst [vmem:[#allocation2 + $0x238] sm:$0xff] %v827
  %836 = vrot.lane.b32.xlu0 %v303, 34
  %v837 = vpop.permute.xlu0 %836
  %838 = vrot.lane.b32.xlu0 %v304, 34
  %v839 = vpop.permute.xlu0 %838
  %840 = vrot.lane.b32.xlu0 %v305, 34
  %v841 = vpop.permute.xlu0 %840
  %842 = vrot.lane.b32.xlu0 %v306, 34
  %v843 = vpop.permute.xlu0 %842
  %vm844 = vcmp.lt.s32.totalorder %v332, 34
  %v845 = vsel %vm844, %v841, %v843
  %v846 = vsel %vm844, %v839, %v841
  %v847 = vsel %vm844, %v837, %v839
  %v848 = vsel %vm844, %v843, %v837
  %s849 = scalar_lea.vmem %s1, 32
  %v850 = vld [vmem:[%s849] ss:$8 sm:$0xf]
  %v852 = vlaneseq
  %v853 = vshrl.u32 %v852, 7
  %v854 = vsub.s32 0, %v853
  %v855 = vrot.slane %v850, %v854
  %v856 = vlaneseq
  %v857 = vshrl.u32 %v856, 7
  %v858 = vsub.s32 1, %v857
  %v859 = vrot.slane %v850, %v858
  %v860 = vlaneseq
  %v861 = vshrl.u32 %v860, 7
  %v862 = vsub.s32 2, %v861
  %v863 = vrot.slane %v850, %v862
  %v864 = vlaneseq
  %v865 = vshrl.u32 %v864, 7
  %v866 = vsub.s32 3, %v865
  %v867 = vrot.slane %v850, %v866
  %v872 = vmul.f32 %v848, %v855
  %v873 = vmul.f32 %v847, %v859
  %v874 = vmul.f32 %v846, %v863
  %v875 = vmul.f32 %v845, %v867
  %876 = vst [vmem:[#allocation2 + $0x240] sm:$0xff] %v872
  %877 = vst [vmem:[#allocation2 + $0x248] sm:$0xff] %v873
  %878 = vst [vmem:[#allocation2 + $0x250] sm:$0xff] %v874
  %879 = vst [vmem:[#allocation2 + $0x258] sm:$0xff] %v875
  %880 = vrot.lane.b32.xlu0 %v303, 33
  %v881 = vpop.permute.xlu0 %880
  %882 = vrot.lane.b32.xlu0 %v304, 33
  %v883 = vpop.permute.xlu0 %882
  %884 = vrot.lane.b32.xlu0 %v305, 33
  %v885 = vpop.permute.xlu0 %884
  %886 = vrot.lane.b32.xlu0 %v306, 33
  %v887 = vpop.permute.xlu0 %886
  %vm888 = vcmp.lt.s32.totalorder %v332, 33
  %v889 = vsel %vm888, %v885, %v887
  %v890 = vsel %vm888, %v883, %v885
  %v891 = vsel %vm888, %v881, %v883
  %v892 = vsel %vm888, %v887, %v881
  %s893 = scalar_lea.vmem %s1, 33
  %v894 = vld [vmem:[%s893] ss:$8 sm:$0xf]
  %v896 = vlaneseq
  %v897 = vshrl.u32 %v896, 7
  %v898 = vsub.s32 0, %v897
  %v899 = vrot.slane %v894, %v898
  %v900 = vlaneseq
  %v901 = vshrl.u32 %v900, 7
  %v902 = vsub.s32 1, %v901
  %v903 = vrot.slane %v894, %v902
  %v904 = vlaneseq
  %v905 = vshrl.u32 %v904, 7
  %v906 = vsub.s32 2, %v905
  %v907 = vrot.slane %v894, %v906
  %v908 = vlaneseq
  %v909 = vshrl.u32 %v908, 7
  %v910 = vsub.s32 3, %v909
  %v911 = vrot.slane %v894, %v910
  %v916 = vmul.f32 %v892, %v899
  %v917 = vmul.f32 %v891, %v903
  %v918 = vmul.f32 %v890, %v907
  %v919 = vmul.f32 %v889, %v911
  %920 = vst [vmem:[#allocation2 + $0x260] sm:$0xff] %v916
  %921 = vst [vmem:[#allocation2 + $0x268] sm:$0xff] %v917
  %922 = vst [vmem:[#allocation2 + $0x270] sm:$0xff] %v918
  %923 = vst [vmem:[#allocation2 + $0x278] sm:$0xff] %v919
  %924 = vrot.lane.b32.xlu0 %v303, 32
  %v925 = vpop.permute.xlu0 %924
  %926 = vrot.lane.b32.xlu0 %v304, 32
  %v927 = vpop.permute.xlu0 %926
  %928 = vrot.lane.b32.xlu0 %v305, 32
  %v929 = vpop.permute.xlu0 %928
  %930 = vrot.lane.b32.xlu0 %v306, 32
  %v931 = vpop.permute.xlu0 %930
  %vm932 = vcmp.lt.s32.totalorder %v332, 32
  %v933 = vsel %vm932, %v929, %v931
  %v934 = vsel %vm932, %v927, %v929
  %v935 = vsel %vm932, %v925, %v927
  %v936 = vsel %vm932, %v931, %v925
  %s937 = scalar_lea.vmem %s1, 34
  %v938 = vld [vmem:[%s937] ss:$8 sm:$0xf]
  %v940 = vlaneseq
  %v941 = vshrl.u32 %v940, 7
  %v942 = vsub.s32 0, %v941
  %v943 = vrot.slane %v938, %v942
  %v944 = vlaneseq
  %v945 = vshrl.u32 %v944, 7
  %v946 = vsub.s32 1, %v945
  %v947 = vrot.slane %v938, %v946
  %v948 = vlaneseq
  %v949 = vshrl.u32 %v948, 7
  %v950 = vsub.s32 2, %v949
  %v951 = vrot.slane %v938, %v950
  %v952 = vlaneseq
  %v953 = vshrl.u32 %v952, 7
  %v954 = vsub.s32 3, %v953
  %v955 = vrot.slane %v938, %v954
  %v960 = vmul.f32 %v936, %v943
  %v961 = vmul.f32 %v935, %v947
  %v962 = vmul.f32 %v934, %v951
  %v963 = vmul.f32 %v933, %v955
  %964 = vst [vmem:[#allocation2 + $0x280] sm:$0xff] %v960
  %965 = vst [vmem:[#allocation2 + $0x288] sm:$0xff] %v961
  %966 = vst [vmem:[#allocation2 + $0x290] sm:$0xff] %v962
  %967 = vst [vmem:[#allocation2 + $0x298] sm:$0xff] %v963
  %968 = vrot.lane.b32.xlu0 %v303, 31
  %v969 = vpop.permute.xlu0 %968
  %970 = vrot.lane.b32.xlu0 %v304, 31
  %v971 = vpop.permute.xlu0 %970
  %972 = vrot.lane.b32.xlu0 %v305, 31
  %v973 = vpop.permute.xlu0 %972
  %974 = vrot.lane.b32.xlu0 %v306, 31
  %v975 = vpop.permute.xlu0 %974
  %vm976 = vcmp.lt.s32.totalorder %v332, 31
  %v977 = vsel %vm976, %v973, %v975
  %v978 = vsel %vm976, %v971, %v973
  %v979 = vsel %vm976, %v969, %v971
  %v980 = vsel %vm976, %v975, %v969
  %s981 = scalar_lea.vmem %s1, 35
  %v982 = vld [vmem:[%s981] ss:$8 sm:$0xf]
  %v984 = vlaneseq
  %v985 = vshrl.u32 %v984, 7
  %v986 = vsub.s32 0, %v985
  %v987 = vrot.slane %v982, %v986
  %v988 = vlaneseq
  %v989 = vshrl.u32 %v988, 7
  %v990 = vsub.s32 1, %v989
  %v991 = vrot.slane %v982, %v990
  %v992 = vlaneseq
  %v993 = vshrl.u32 %v992, 7
  %v994 = vsub.s32 2, %v993
  %v995 = vrot.slane %v982, %v994
  %v996 = vlaneseq
  %v997 = vshrl.u32 %v996, 7
  %v998 = vsub.s32 3, %v997
  %v999 = vrot.slane %v982, %v998
  %v1004 = vmul.f32 %v980, %v987
  %v1005 = vmul.f32 %v979, %v991
  %v1006 = vmul.f32 %v978, %v995
  %v1007 = vmul.f32 %v977, %v999
  %1008 = vst [vmem:[#allocation2 + $0x2a0] sm:$0xff] %v1004
  %1009 = vst [vmem:[#allocation2 + $0x2a8] sm:$0xff] %v1005
  %1010 = vst [vmem:[#allocation2 + $0x2b0] sm:$0xff] %v1006
  %1011 = vst [vmem:[#allocation2 + $0x2b8] sm:$0xff] %v1007
  %1012 = vrot.lane.b32.xlu0 %v303, 30
  %v1013 = vpop.permute.xlu0 %1012
  %1014 = vrot.lane.b32.xlu0 %v304, 30
  %v1015 = vpop.permute.xlu0 %1014
  %1016 = vrot.lane.b32.xlu0 %v305, 30
  %v1017 = vpop.permute.xlu0 %1016
  %1018 = vrot.lane.b32.xlu0 %v306, 30
  %v1019 = vpop.permute.xlu0 %1018
  %vm1020 = vcmp.lt.s32.totalorder %v332, 30
  %v1021 = vsel %vm1020, %v1017, %v1019
  %v1022 = vsel %vm1020, %v1015, %v1017
  %v1023 = vsel %vm1020, %v1013, %v1015
  %v1024 = vsel %vm1020, %v1019, %v1013
  %s1025 = scalar_lea.vmem %s1, 36
  %v1026 = vld [vmem:[%s1025] ss:$8 sm:$0xf]
  %v1028 = vlaneseq
  %v1029 = vshrl.u32 %v1028, 7
  %v1030 = vsub.s32 0, %v1029
  %v1031 = vrot.slane %v1026, %v1030
  %v1032 = vlaneseq
  %v1033 = vshrl.u32 %v1032, 7
  %v1034 = vsub.s32 1, %v1033
  %v1035 = vrot.slane %v1026, %v1034
  %v1036 = vlaneseq
  %v1037 = vshrl.u32 %v1036, 7
  %v1038 = vsub.s32 2, %v1037
  %v1039 = vrot.slane %v1026, %v1038
  %v1040 = vlaneseq
  %v1041 = vshrl.u32 %v1040, 7
  %v1042 = vsub.s32 3, %v1041
  %v1043 = vrot.slane %v1026, %v1042
  %v1048 = vmul.f32 %v1024, %v1031
  %v1049 = vmul.f32 %v1023, %v1035
  %v1050 = vmul.f32 %v1022, %v1039
  %v1051 = vmul.f32 %v1021, %v1043
  %1052 = vst [vmem:[#allocation2 + $0x2c0] sm:$0xff] %v1048
  %1053 = vst [vmem:[#allocation2 + $0x2c8] sm:$0xff] %v1049
  %1054 = vst [vmem:[#allocation2 + $0x2d0] sm:$0xff] %v1050
  %1055 = vst [vmem:[#allocation2 + $0x2d8] sm:$0xff] %v1051
  %1056 = vrot.lane.b32.xlu0 %v303, 18
  %v1057 = vpop.permute.xlu0 %1056
  %1058 = vrot.lane.b32.xlu0 %v304, 18
  %v1059 = vpop.permute.xlu0 %1058
  %1060 = vrot.lane.b32.xlu0 %v305, 18
  %v1061 = vpop.permute.xlu0 %1060
  %1062 = vrot.lane.b32.xlu0 %v306, 18
  %v1063 = vpop.permute.xlu0 %1062
  %vm1064 = vcmp.lt.s32.totalorder %v332, 18
  %v1065 = vsel %vm1064, %v1061, %v1063
  %v1066 = vsel %vm1064, %v1059, %v1061
  %v1067 = vsel %vm1064, %v1057, %v1059
  %v1068 = vsel %vm1064, %v1063, %v1057
  %s1069 = scalar_lea.vmem %s1, 37
  %v1070 = vld [vmem:[%s1069] ss:$8 sm:$0xf]
  %v1072 = vlaneseq
  %v1073 = vshrl.u32 %v1072, 7
  %v1074 = vsub.s32 0, %v1073
  %v1075 = vrot.slane %v1070, %v1074
  %v1076 = vlaneseq
  %v1077 = vshrl.u32 %v1076, 7
  %v1078 = vsub.s32 1, %v1077
  %v1079 = vrot.slane %v1070, %v1078
  %v1080 = vlaneseq
  %v1081 = vshrl.u32 %v1080, 7
  %v1082 = vsub.s32 2, %v1081
  %v1083 = vrot.slane %v1070, %v1082
  %v1084 = vlaneseq
  %v1085 = vshrl.u32 %v1084, 7
  %v1086 = vsub.s32 3, %v1085
  %v1087 = vrot.slane %v1070, %v1086
  %v1092 = vmul.f32 %v1068, %v1075
  %v1093 = vmul.f32 %v1067, %v1079
  %v1094 = vmul.f32 %v1066, %v1083
  %v1095 = vmul.f32 %v1065, %v1087
  %1096 = vst [vmem:[#allocation2 + $0x2e0] sm:$0xff] %v1092
  %1097 = vst [vmem:[#allocation2 + $0x2e8] sm:$0xff] %v1093
  %1098 = vst [vmem:[#allocation2 + $0x2f0] sm:$0xff] %v1094
  %1099 = vst [vmem:[#allocation2 + $0x2f8] sm:$0xff] %v1095
  %1100 = vrot.lane.b32.xlu0 %v303, 14
  %v1101 = vpop.permute.xlu0 %1100
  %1102 = vrot.lane.b32.xlu0 %v304, 14
  %v1103 = vpop.permute.xlu0 %1102
  %1104 = vrot.lane.b32.xlu0 %v305, 14
  %v1105 = vpop.permute.xlu0 %1104
  %1106 = vrot.lane.b32.xlu0 %v306, 14
  %v1107 = vpop.permute.xlu0 %1106
  %vm1108 = vcmp.lt.s32.totalorder %v332, 14
  %v1109 = vsel %vm1108, %v1105, %v1107
  %v1110 = vsel %vm1108, %v1103, %v1105
  %v1111 = vsel %vm1108, %v1101, %v1103
  %v1112 = vsel %vm1108, %v1107, %v1101
  %s1113 = scalar_lea.vmem %s1, 38
  %v1114 = vld [vmem:[%s1113] ss:$8 sm:$0xf]
  %v1116 = vlaneseq
  %v1117 = vshrl.u32 %v1116, 7
  %v1118 = vsub.s32 0, %v1117
  %v1119 = vrot.slane %v1114, %v1118
  %v1120 = vlaneseq
  %v1121 = vshrl.u32 %v1120, 7
  %v1122 = vsub.s32 1, %v1121
  %v1123 = vrot.slane %v1114, %v1122
  %v1124 = vlaneseq
  %v1125 = vshrl.u32 %v1124, 7
  %v1126 = vsub.s32 2, %v1125
  %v1127 = vrot.slane %v1114, %v1126
  %v1128 = vlaneseq
  %v1129 = vshrl.u32 %v1128, 7
  %v1130 = vsub.s32 3, %v1129
  %v1131 = vrot.slane %v1114, %v1130
  %v1136 = vmul.f32 %v1112, %v1119
  %v1137 = vmul.f32 %v1111, %v1123
  %v1138 = vmul.f32 %v1110, %v1127
  %v1139 = vmul.f32 %v1109, %v1131
  %1140 = vst [vmem:[#allocation2 + $0x300] sm:$0xff] %v1136
  %1141 = vst [vmem:[#allocation2 + $0x308] sm:$0xff] %v1137
  %1142 = vst [vmem:[#allocation2 + $0x310] sm:$0xff] %v1138
  %1143 = vst [vmem:[#allocation2 + $0x318] sm:$0xff] %v1139
  %1144 = vrot.lane.b32.xlu0 %v303, 2
  %v1145 = vpop.permute.xlu0 %1144
  %1146 = vrot.lane.b32.xlu0 %v304, 2
  %v1147 = vpop.permute.xlu0 %1146
  %1148 = vrot.lane.b32.xlu0 %v305, 2
  %v1149 = vpop.permute.xlu0 %1148
  %1150 = vrot.lane.b32.xlu0 %v306, 2
  %v1151 = vpop.permute.xlu0 %1150
  %vm1152 = vcmp.lt.s32.totalorder %v332, 2
  %v1153 = vsel %vm1152, %v1149, %v1151
  %v1154 = vsel %vm1152, %v1147, %v1149
  %v1155 = vsel %vm1152, %v1145, %v1147
  %v1156 = vsel %vm1152, %v1151, %v1145
  %s1157 = scalar_lea.vmem %s1, 39
  %v1158 = vld [vmem:[%s1157] ss:$8 sm:$0xf]
  %v1160 = vlaneseq
  %v1161 = vshrl.u32 %v1160, 7
  %v1162 = vsub.s32 0, %v1161
  %v1163 = vrot.slane %v1158, %v1162
  %v1164 = vlaneseq
  %v1165 = vshrl.u32 %v1164, 7
  %v1166 = vsub.s32 1, %v1165
  %v1167 = vrot.slane %v1158, %v1166
  %v1168 = vlaneseq
  %v1169 = vshrl.u32 %v1168, 7
  %v1170 = vsub.s32 2, %v1169
  %v1171 = vrot.slane %v1158, %v1170
  %v1172 = vlaneseq
  %v1173 = vshrl.u32 %v1172, 7
  %v1174 = vsub.s32 3, %v1173
  %v1175 = vrot.slane %v1158, %v1174
  %v1180 = vmul.f32 %v1156, %v1163
  %v1181 = vmul.f32 %v1155, %v1167
  %v1182 = vmul.f32 %v1154, %v1171
  %v1183 = vmul.f32 %v1153, %v1175
  %1184 = vst [vmem:[#allocation2 + $0x320] sm:$0xff] %v1180
  %1185 = vst [vmem:[#allocation2 + $0x328] sm:$0xff] %v1181
  %1186 = vst [vmem:[#allocation2 + $0x330] sm:$0xff] %v1182
  %1187 = vst [vmem:[#allocation2 + $0x338] sm:$0xff] %v1183
  %1188 = vrot.lane.b32.xlu0 %v303, 126
  %v1189 = vpop.permute.xlu0 %1188
  %1190 = vrot.lane.b32.xlu0 %v304, 126
  %v1191 = vpop.permute.xlu0 %1190
  %1192 = vrot.lane.b32.xlu0 %v305, 126
  %v1193 = vpop.permute.xlu0 %1192
  %1194 = vrot.lane.b32.xlu0 %v306, 126
  %v1195 = vpop.permute.xlu0 %1194
  %vm1196 = vcmp.lt.s32.totalorder %v332, 126
  %v1197 = vsel %vm1196, %v1193, %v1195
  %v1198 = vsel %vm1196, %v1191, %v1193
  %v1199 = vsel %vm1196, %v1189, %v1191
  %v1200 = vsel %vm1196, %v1195, %v1189
  %s1201 = scalar_lea.vmem %s1, 64
  %v1202 = vld [vmem:[%s1201] ss:$8 sm:$0xf]
  %v1204 = vlaneseq
  %v1205 = vshrl.u32 %v1204, 7
  %v1206 = vsub.s32 0, %v1205
  %v1207 = vrot.slane %v1202, %v1206
  %v1208 = vlaneseq
  %v1209 = vshrl.u32 %v1208, 7
  %v1210 = vsub.s32 1, %v1209
  %v1211 = vrot.slane %v1202, %v1210
  %v1212 = vlaneseq
  %v1213 = vshrl.u32 %v1212, 7
  %v1214 = vsub.s32 2, %v1213
  %v1215 = vrot.slane %v1202, %v1214
  %v1216 = vlaneseq
  %v1217 = vshrl.u32 %v1216, 7
  %v1218 = vsub.s32 3, %v1217
  %v1219 = vrot.slane %v1202, %v1218
  %v1224 = vmul.f32 %v1199, %v1207
  %v1225 = vmul.f32 %v1198, %v1211
  %v1226 = vmul.f32 %v1197, %v1215
  %v1227 = vmul.f32 %v1200, %v1219
  %1228 = vst [vmem:[#allocation2 + $0x340] sm:$0xff] %v1224
  %1229 = vst [vmem:[#allocation2 + $0x348] sm:$0xff] %v1225
  %1230 = vst [vmem:[#allocation2 + $0x350] sm:$0xff] %v1226
  %1231 = vst [vmem:[#allocation2 + $0x358] sm:$0xff] %v1227
  %1232 = vrot.lane.b32.xlu0 %v303, 114
  %v1233 = vpop.permute.xlu0 %1232
  %1234 = vrot.lane.b32.xlu0 %v304, 114
  %v1235 = vpop.permute.xlu0 %1234
  %1236 = vrot.lane.b32.xlu0 %v305, 114
  %v1237 = vpop.permute.xlu0 %1236
  %1238 = vrot.lane.b32.xlu0 %v306, 114
  %v1239 = vpop.permute.xlu0 %1238
  %vm1240 = vcmp.lt.s32.totalorder %v332, 114
  %v1241 = vsel %vm1240, %v1237, %v1239
  %v1242 = vsel %vm1240, %v1235, %v1237
  %v1243 = vsel %vm1240, %v1233, %v1235
  %v1244 = vsel %vm1240, %v1239, %v1233
  %s1245 = scalar_lea.vmem %s1, 65
  %v1246 = vld [vmem:[%s1245] ss:$8 sm:$0xf]
  %v1248 = vlaneseq
  %v1249 = vshrl.u32 %v1248, 7
  %v1250 = vsub.s32 0, %v1249
  %v1251 = vrot.slane %v1246, %v1250
  %v1252 = vlaneseq
  %v1253 = vshrl.u32 %v1252, 7
  %v1254 = vsub.s32 1, %v1253
  %v1255 = vrot.slane %v1246, %v1254
  %v1256 = vlaneseq
  %v1257 = vshrl.u32 %v1256, 7
  %v1258 = vsub.s32 2, %v1257
  %v1259 = vrot.slane %v1246, %v1258
  %v1260 = vlaneseq
  %v1261 = vshrl.u32 %v1260, 7
  %v1262 = vsub.s32 3, %v1261
  %v1263 = vrot.slane %v1246, %v1262
  %v1268 = vmul.f32 %v1243, %v1251
  %v1269 = vmul.f32 %v1242, %v1255
  %v1270 = vmul.f32 %v1241, %v1259
  %v1271 = vmul.f32 %v1244, %v1263
  %1272 = vst [vmem:[#allocation2 + $0x360] sm:$0xff] %v1268
  %1273 = vst [vmem:[#allocation2 + $0x368] sm:$0xff] %v1269
  %1274 = vst [vmem:[#allocation2 + $0x370] sm:$0xff] %v1270
  %1275 = vst [vmem:[#allocation2 + $0x378] sm:$0xff] %v1271
  %1276 = vrot.lane.b32.xlu0 %v303, 110
  %v1277 = vpop.permute.xlu0 %1276
  %1278 = vrot.lane.b32.xlu0 %v304, 110
  %v1279 = vpop.permute.xlu0 %1278
  %1280 = vrot.lane.b32.xlu0 %v305, 110
  %v1281 = vpop.permute.xlu0 %1280
  %1282 = vrot.lane.b32.xlu0 %v306, 110
  %v1283 = vpop.permute.xlu0 %1282
  %vm1284 = vcmp.lt.s32.totalorder %v332, 110
  %v1285 = vsel %vm1284, %v1281, %v1283
  %v1286 = vsel %vm1284, %v1279, %v1281
  %v1287 = vsel %vm1284, %v1277, %v1279
  %v1288 = vsel %vm1284, %v1283, %v1277
  %s1289 = scalar_lea.vmem %s1, 66
  %v1290 = vld [vmem:[%s1289] ss:$8 sm:$0xf]
  %v1292 = vlaneseq
  %v1293 = vshrl.u32 %v1292, 7
  %v1294 = vsub.s32 0, %v1293
  %v1295 = vrot.slane %v1290, %v1294
  %v1296 = vlaneseq
  %v1297 = vshrl.u32 %v1296, 7
  %v1298 = vsub.s32 1, %v1297
  %v1299 = vrot.slane %v1290, %v1298
  %v1300 = vlaneseq
  %v1301 = vshrl.u32 %v1300, 7
  %v1302 = vsub.s32 2, %v1301
  %v1303 = vrot.slane %v1290, %v1302
  %v1304 = vlaneseq
  %v1305 = vshrl.u32 %v1304, 7
  %v1306 = vsub.s32 3, %v1305
  %v1307 = vrot.slane %v1290, %v1306
  %v1312 = vmul.f32 %v1287, %v1295
  %v1313 = vmul.f32 %v1286, %v1299
  %v1314 = vmul.f32 %v1285, %v1303
  %v1315 = vmul.f32 %v1288, %v1307
  %1316 = vst [vmem:[#allocation2 + $0x380] sm:$0xff] %v1312
  %1317 = vst [vmem:[#allocation2 + $0x388] sm:$0xff] %v1313
  %1318 = vst [vmem:[#allocation2 + $0x390] sm:$0xff] %v1314
  %1319 = vst [vmem:[#allocation2 + $0x398] sm:$0xff] %v1315
  %1320 = vrot.lane.b32.xlu0 %v303, 98
  %v1321 = vpop.permute.xlu0 %1320
  %1322 = vrot.lane.b32.xlu0 %v304, 98
  %v1323 = vpop.permute.xlu0 %1322
  %1324 = vrot.lane.b32.xlu0 %v305, 98
  %v1325 = vpop.permute.xlu0 %1324
  %1326 = vrot.lane.b32.xlu0 %v306, 98
  %v1327 = vpop.permute.xlu0 %1326
  %vm1328 = vcmp.lt.s32.totalorder %v332, 98
  %v1329 = vsel %vm1328, %v1325, %v1327
  %v1330 = vsel %vm1328, %v1323, %v1325
  %v1331 = vsel %vm1328, %v1321, %v1323
  %v1332 = vsel %vm1328, %v1327, %v1321
  %s1333 = scalar_lea.vmem %s1, 67
  %v1334 = vld [vmem:[%s1333] ss:$8 sm:$0xf]
  %v1336 = vlaneseq
  %v1337 = vshrl.u32 %v1336, 7
  %v1338 = vsub.s32 0, %v1337
  %v1339 = vrot.slane %v1334, %v1338
  %v1340 = vlaneseq
  %v1341 = vshrl.u32 %v1340, 7
  %v1342 = vsub.s32 1, %v1341
  %v1343 = vrot.slane %v1334, %v1342
  %v1344 = vlaneseq
  %v1345 = vshrl.u32 %v1344, 7
  %v1346 = vsub.s32 2, %v1345
  %v1347 = vrot.slane %v1334, %v1346
  %v1348 = vlaneseq
  %v1349 = vshrl.u32 %v1348, 7
  %v1350 = vsub.s32 3, %v1349
  %v1351 = vrot.slane %v1334, %v1350
  %v1356 = vmul.f32 %v1331, %v1339
  %v1357 = vmul.f32 %v1330, %v1343
  %v1358 = vmul.f32 %v1329, %v1347
  %v1359 = vmul.f32 %v1332, %v1351
  %1360 = vst [vmem:[#allocation2 + $0x3a0] sm:$0xff] %v1356
  %1361 = vst [vmem:[#allocation2 + $0x3a8] sm:$0xff] %v1357
  %1362 = vst [vmem:[#allocation2 + $0x3b0] sm:$0xff] %v1358
  %1363 = vst [vmem:[#allocation2 + $0x3b8] sm:$0xff] %v1359
  %1364 = vrot.lane.b32.xlu0 %v303, 97
  %v1365 = vpop.permute.xlu0 %1364
  %1366 = vrot.lane.b32.xlu0 %v304, 97
  %v1367 = vpop.permute.xlu0 %1366
  %1368 = vrot.lane.b32.xlu0 %v305, 97
  %v1369 = vpop.permute.xlu0 %1368
  %1370 = vrot.lane.b32.xlu0 %v306, 97
  %v1371 = vpop.permute.xlu0 %1370
  %vm1372 = vcmp.lt.s32.totalorder %v332, 97
  %v1373 = vsel %vm1372, %v1369, %v1371
  %v1374 = vsel %vm1372, %v1367, %v1369
  %v1375 = vsel %vm1372, %v1365, %v1367
  %v1376 = vsel %vm1372, %v1371, %v1365
  %s1377 = scalar_lea.vmem %s1, 68
  %v1378 = vld [vmem:[%s1377] ss:$8 sm:$0xf]
  %v1380 = vlaneseq
  %v1381 = vshrl.u32 %v1380, 7
  %v1382 = vsub.s32 0, %v1381
  %v1383 = vrot.slane %v1378, %v1382
  %v1384 = vlaneseq
  %v1385 = vshrl.u32 %v1384, 7
  %v1386 = vsub.s32 1, %v1385
  %v1387 = vrot.slane %v1378, %v1386
  %v1388 = vlaneseq
  %v1389 = vshrl.u32 %v1388, 7
  %v1390 = vsub.s32 2, %v1389
  %v1391 = vrot.slane %v1378, %v1390
  %v1392 = vlaneseq
  %v1393 = vshrl.u32 %v1392, 7
  %v1394 = vsub.s32 3, %v1393
  %v1395 = vrot.slane %v1378, %v1394
  %v1400 = vmul.f32 %v1375, %v1383
  %v1401 = vmul.f32 %v1374, %v1387
  %v1402 = vmul.f32 %v1373, %v1391
  %v1403 = vmul.f32 %v1376, %v1395
  %1404 = vst [vmem:[#allocation2 + $0x3c0] sm:$0xff] %v1400
  %1405 = vst [vmem:[#allocation2 + $0x3c8] sm:$0xff] %v1401
  %1406 = vst [vmem:[#allocation2 + $0x3d0] sm:$0xff] %v1402
  %1407 = vst [vmem:[#allocation2 + $0x3d8] sm:$0xff] %v1403
  %1408 = vrot.lane.b32.xlu0 %v303, 96
  %v1409 = vpop.permute.xlu0 %1408
  %1410 = vrot.lane.b32.xlu0 %v304, 96
  %v1411 = vpop.permute.xlu0 %1410
  %1412 = vrot.lane.b32.xlu0 %v305, 96
  %v1413 = vpop.permute.xlu0 %1412
  %1414 = vrot.lane.b32.xlu0 %v306, 96
  %v1415 = vpop.permute.xlu0 %1414
  %vm1416 = vcmp.lt.s32.totalorder %v332, 96
  %v1417 = vsel %vm1416, %v1413, %v1415
  %v1418 = vsel %vm1416, %v1411, %v1413
  %v1419 = vsel %vm1416, %v1409, %v1411
  %v1420 = vsel %vm1416, %v1415, %v1409
  %s1421 = scalar_lea.vmem %s1, 69
  %v1422 = vld [vmem:[%s1421] ss:$8 sm:$0xf]
  %v1424 = vlaneseq
  %v1425 = vshrl.u32 %v1424, 7
  %v1426 = vsub.s32 0, %v1425
  %v1427 = vrot.slane %v1422, %v1426
  %v1428 = vlaneseq
  %v1429 = vshrl.u32 %v1428, 7
  %v1430 = vsub.s32 1, %v1429
  %v1431 = vrot.slane %v1422, %v1430
  %v1432 = vlaneseq
  %v1433 = vshrl.u32 %v1432, 7
  %v1434 = vsub.s32 2, %v1433
  %v1435 = vrot.slane %v1422, %v1434
  %v1436 = vlaneseq
  %v1437 = vshrl.u32 %v1436, 7
  %v1438 = vsub.s32 3, %v1437
  %v1439 = vrot.slane %v1422, %v1438
  %v1444 = vmul.f32 %v1419, %v1427
  %v1445 = vmul.f32 %v1418, %v1431
  %v1446 = vmul.f32 %v1417, %v1435
  %v1447 = vmul.f32 %v1420, %v1439
  %1448 = vst [vmem:[#allocation2 + $0x3e0] sm:$0xff] %v1444
  %1449 = vst [vmem:[#allocation2 + $0x3e8] sm:$0xff] %v1445
  %1450 = vst [vmem:[#allocation2 + $0x3f0] sm:$0xff] %v1446
  %1451 = vst [vmem:[#allocation2 + $0x3f8] sm:$0xff] %v1447
  %1452 = vrot.lane.b32.xlu0 %v303, 95
  %v1453 = vpop.permute.xlu0 %1452
  %1454 = vrot.lane.b32.xlu0 %v304, 95
  %v1455 = vpop.permute.xlu0 %1454
  %1456 = vrot.lane.b32.xlu0 %v305, 95
  %v1457 = vpop.permute.xlu0 %1456
  %1458 = vrot.lane.b32.xlu0 %v306, 95
  %v1459 = vpop.permute.xlu0 %1458
  %vm1460 = vcmp.lt.s32.totalorder %v332, 95
  %v1461 = vsel %vm1460, %v1457, %v1459
  %v1462 = vsel %vm1460, %v1455, %v1457
  %v1463 = vsel %vm1460, %v1453, %v1455
  %v1464 = vsel %vm1460, %v1459, %v1453
  %s1465 = scalar_lea.vmem %s1, 70
  %v1466 = vld [vmem:[%s1465] ss:$8 sm:$0xf]
  %v1468 = vlaneseq
  %v1469 = vshrl.u32 %v1468, 7
  %v1470 = vsub.s32 0, %v1469
  %v1471 = vrot.slane %v1466, %v1470
  %v1472 = vlaneseq
  %v1473 = vshrl.u32 %v1472, 7
  %v1474 = vsub.s32 1, %v1473
  %v1475 = vrot.slane %v1466, %v1474
  %v1476 = vlaneseq
  %v1477 = vshrl.u32 %v1476, 7
  %v1478 = vsub.s32 2, %v1477
  %v1479 = vrot.slane %v1466, %v1478
  %v1480 = vlaneseq
  %v1481 = vshrl.u32 %v1480, 7
  %v1482 = vsub.s32 3, %v1481
  %v1483 = vrot.slane %v1466, %v1482
  %v1488 = vmul.f32 %v1463, %v1471
  %v1489 = vmul.f32 %v1462, %v1475
  %v1490 = vmul.f32 %v1461, %v1479
  %v1491 = vmul.f32 %v1464, %v1483
  %1492 = vst [vmem:[#allocation2 + $0x400] sm:$0xff] %v1488
  %1493 = vst [vmem:[#allocation2 + $0x408] sm:$0xff] %v1489
  %1494 = vst [vmem:[#allocation2 + $0x410] sm:$0xff] %v1490
  %1495 = vst [vmem:[#allocation2 + $0x418] sm:$0xff] %v1491
  %1496 = vrot.lane.b32.xlu0 %v303, 94
  %v1497 = vpop.permute.xlu0 %1496
  %1498 = vrot.lane.b32.xlu0 %v304, 94
  %v1499 = vpop.permute.xlu0 %1498
  %1500 = vrot.lane.b32.xlu0 %v305, 94
  %v1501 = vpop.permute.xlu0 %1500
  %1502 = vrot.lane.b32.xlu0 %v306, 94
  %v1503 = vpop.permute.xlu0 %1502
  %vm1504 = vcmp.lt.s32.totalorder %v332, 94
  %v1505 = vsel %vm1504, %v1501, %v1503
  %v1506 = vsel %vm1504, %v1499, %v1501
  %v1507 = vsel %vm1504, %v1497, %v1499
  %v1508 = vsel %vm1504, %v1503, %v1497
  %s1509 = scalar_lea.vmem %s1, 71
  %v1510 = vld [vmem:[%s1509] ss:$8 sm:$0xf]
  %v1512 = vlaneseq
  %v1513 = vshrl.u32 %v1512, 7
  %v1514 = vsub.s32 0, %v1513
  %v1515 = vrot.slane %v1510, %v1514
  %v1516 = vlaneseq
  %v1517 = vshrl.u32 %v1516, 7
  %v1518 = vsub.s32 1, %v1517
  %v1519 = vrot.slane %v1510, %v1518
  %v1520 = vlaneseq
  %v1521 = vshrl.u32 %v1520, 7
  %v1522 = vsub.s32 2, %v1521
  %v1523 = vrot.slane %v1510, %v1522
  %v1524 = vlaneseq
  %v1525 = vshrl.u32 %v1524, 7
  %v1526 = vsub.s32 3, %v1525
  %v1527 = vrot.slane %v1510, %v1526
  %v1532 = vmul.f32 %v1507, %v1515
  %v1533 = vmul.f32 %v1506, %v1519
  %v1534 = vmul.f32 %v1505, %v1523
  %v1535 = vmul.f32 %v1508, %v1527
  %1536 = vst [vmem:[#allocation2 + $0x420] sm:$0xff] %v1532
  %1537 = vst [vmem:[#allocation2 + $0x428] sm:$0xff] %v1533
  %1538 = vst [vmem:[#allocation2 + $0x430] sm:$0xff] %v1534
  %1539 = vst [vmem:[#allocation2 + $0x438] sm:$0xff] %v1535
  %v1540 = vld [vmem:[%s3] sm:$0xff]
  %v1541 = vld [vmem:[%s3 + $0x8] sm:$0xff]
  %v1542 = vld [vmem:[%s3 + $0x10] sm:$0xff]
  %v1543 = vld [vmem:[%s3 + $0x18] sm:$0xff]
  %v1544 = vld [vmem:[%s3 + $0x20] sm:$0xff]
  %v1545 = vld [vmem:[%s3 + $0x28] sm:$0xff]
  %v1546 = vld [vmem:[#allocation2] sm:$0xff]
  %v1547 = vld [vmem:[#allocation2 + $0x8] sm:$0xff]
  %v1548 = vld [vmem:[#allocation2 + $0x10] sm:$0xff]
  %v1549 = vld [vmem:[#allocation2 + $0x18] sm:$0xff]
  %v1550 = vld [vmem:[#allocation2 + $0x20] sm:$0xff]
  %v1551 = vld [vmem:[#allocation2 + $0x28] sm:$0xff]
  %v1552 = vld [vmem:[#allocation2 + $0x30] sm:$0xff]
  %v1553 = vld [vmem:[#allocation2 + $0x38] sm:$0xff]
  %v1554 = vld [vmem:[#allocation2 + $0x40] sm:$0xff]
  %v1555 = vld [vmem:[#allocation2 + $0x48] sm:$0xff]
  %v1556 = vld [vmem:[#allocation2 + $0x50] sm:$0xff]
  %v1557 = vld [vmem:[#allocation2 + $0x58] sm:$0xff]
  %v1558 = vld [vmem:[#allocation2 + $0x60] sm:$0xff]
  %v1559 = vld [vmem:[#allocation2 + $0x68] sm:$0xff]
  %v1560 = vld [vmem:[#allocation2 + $0x70] sm:$0xff]
  %v1561 = vld [vmem:[#allocation2 + $0x78] sm:$0xff]
  %v1562 = vld [vmem:[#allocation2 + $0x80] sm:$0xff]
  %v1563 = vld [vmem:[#allocation2 + $0x88] sm:$0xff]
  %v1564 = vld [vmem:[#allocation2 + $0x90] sm:$0xff]
  %v1565 = vld [vmem:[#allocation2 + $0x98] sm:$0xff]
  %v1566 = vld [vmem:[#allocation2 + $0xa0] sm:$0xff]
  %v1567 = vld [vmem:[#allocation2 + $0xa8] sm:$0xff]
  %v1568 = vld [vmem:[#allocation2 + $0xb0] sm:$0xff]
  %v1569 = vld [vmem:[#allocation2 + $0xb8] sm:$0xff]
  %v1570 = vld [vmem:[#allocation2 + $0xc0] sm:$0xff]
  %v1571 = vld [vmem:[#allocation2 + $0xc8] sm:$0xff]
  %v1572 = vld [vmem:[#allocation2 + $0xd0] sm:$0xff]
  %v1573 = vld [vmem:[#allocation2 + $0xd8] sm:$0xff]
  %v1574 = vld [vmem:[#allocation2 + $0xe0] sm:$0xff]
  %v1575 = vld [vmem:[#allocation2 + $0xe8] sm:$0xff]
  %v1576 = vld [vmem:[#allocation2 + $0xf0] sm:$0xff]
  %v1577 = vld [vmem:[#allocation2 + $0xf8] sm:$0xff]
  %v1578 = vld [vmem:[#allocation2 + $0x100] sm:$0xff]
  %v1579 = vld [vmem:[#allocation2 + $0x108] sm:$0xff]
  %v1580 = vld [vmem:[#allocation2 + $0x110] sm:$0xff]
  %v1581 = vld [vmem:[#allocation2 + $0x118] sm:$0xff]
  %v1582 = vld [vmem:[#allocation2 + $0x120] sm:$0xff]
  %v1583 = vld [vmem:[#allocation2 + $0x128] sm:$0xff]
  %v1584 = vld [vmem:[#allocation2 + $0x130] sm:$0xff]
  %v1585 = vld [vmem:[#allocation2 + $0x138] sm:$0xff]
  %v1586 = vld [vmem:[#allocation2 + $0x140] sm:$0xff]
  %v1587 = vld [vmem:[#allocation2 + $0x148] sm:$0xff]
  %v1588 = vld [vmem:[#allocation2 + $0x150] sm:$0xff]
  %v1589 = vld [vmem:[#allocation2 + $0x158] sm:$0xff]
  %v1590 = vld [vmem:[#allocation2 + $0x160] sm:$0xff]
  %v1591 = vld [vmem:[#allocation2 + $0x168] sm:$0xff]
  %v1592 = vld [vmem:[#allocation2 + $0x170] sm:$0xff]
  %v1593 = vld [vmem:[#allocation2 + $0x178] sm:$0xff]
  %v1594 = vld [vmem:[#allocation2 + $0x180] sm:$0xff]
  %v1595 = vld [vmem:[#allocation2 + $0x188] sm:$0xff]
  %v1596 = vld [vmem:[#allocation2 + $0x190] sm:$0xff]
  %v1597 = vld [vmem:[#allocation2 + $0x198] sm:$0xff]
  %v1598 = vld [vmem:[#allocation2 + $0x1a0] sm:$0xff]
  %v1599 = vld [vmem:[#allocation2 + $0x1a8] sm:$0xff]
  %v1600 = vld [vmem:[#allocation2 + $0x1b0] sm:$0xff]
  %v1601 = vld [vmem:[#allocation2 + $0x1b8] sm:$0xff]
  %v1602 = vld [vmem:[#allocation2 + $0x1c0] sm:$0xff]
  %v1603 = vld [vmem:[#allocation2 + $0x1c8] sm:$0xff]
  %v1604 = vld [vmem:[#allocation2 + $0x1d0] sm:$0xff]
  %v1605 = vld [vmem:[#allocation2 + $0x1d8] sm:$0xff]
  %v1606 = vld [vmem:[#allocation2 + $0x1e0] sm:$0xff]
  %v1607 = vld [vmem:[#allocation2 + $0x1e8] sm:$0xff]
  %v1608 = vld [vmem:[#allocation2 + $0x1f0] sm:$0xff]
  %v1609 = vld [vmem:[#allocation2 + $0x1f8] sm:$0xff]
  %v1610 = vld [vmem:[#allocation2 + $0x200] sm:$0xff]
  %v1611 = vld [vmem:[#allocation2 + $0x208] sm:$0xff]
  %v1612 = vld [vmem:[#allocation2 + $0x210] sm:$0xff]
  %v1613 = vld [vmem:[#allocation2 + $0x218] sm:$0xff]
  %v1614 = vld [vmem:[#allocation2 + $0x220] sm:$0xff]
  %v1615 = vld [vmem:[#allocation2 + $0x228] sm:$0xff]
  %v1616 = vld [vmem:[#allocation2 + $0x230] sm:$0xff]
  %v1617 = vld [vmem:[#allocation2 + $0x238] sm:$0xff]
  %v1618 = vld [vmem:[#allocation2 + $0x240] sm:$0xff]
  %v1619 = vld [vmem:[#allocation2 + $0x248] sm:$0xff]
  %v1620 = vld [vmem:[#allocation2 + $0x250] sm:$0xff]
  %v1621 = vld [vmem:[#allocation2 + $0x258] sm:$0xff]
  %v1622 = vld [vmem:[#allocation2 + $0x260] sm:$0xff]
  %v1623 = vld [vmem:[#allocation2 + $0x268] sm:$0xff]
  %v1624 = vld [vmem:[#allocation2 + $0x270] sm:$0xff]
  %v1625 = vld [vmem:[#allocation2 + $0x278] sm:$0xff]
  %v1626 = vld [vmem:[#allocation2 + $0x280] sm:$0xff]
  %v1627 = vld [vmem:[#allocation2 + $0x288] sm:$0xff]
  %v1628 = vld [vmem:[#allocation2 + $0x290] sm:$0xff]
  %v1629 = vld [vmem:[#allocation2 + $0x298] sm:$0xff]
  %v1630 = vld [vmem:[#allocation2 + $0x2a0] sm:$0xff]
  %v1631 = vld [vmem:[#allocation2 + $0x2a8] sm:$0xff]
  %v1632 = vld [vmem:[#allocation2 + $0x2b0] sm:$0xff]
  %v1633 = vld [vmem:[#allocation2 + $0x2b8] sm:$0xff]
  %v1634 = vld [vmem:[#allocation2 + $0x2c0] sm:$0xff]
  %v1635 = vld [vmem:[#allocation2 + $0x2c8] sm:$0xff]
  %v1636 = vld [vmem:[#allocation2 + $0x2d0] sm:$0xff]
  %v1637 = vld [vmem:[#allocation2 + $0x2d8] sm:$0xff]
  %v1638 = vld [vmem:[#allocation2 + $0x2e0] sm:$0xff]
  %v1639 = vld [vmem:[#allocation2 + $0x2e8] sm:$0xff]
  %v1640 = vld [vmem:[#allocation2 + $0x2f0] sm:$0xff]
  %v1641 = vld [vmem:[#allocation2 + $0x2f8] sm:$0xff]
  %v1642 = vld [vmem:[#allocation2 + $0x300] sm:$0xff]
  %v1643 = vld [vmem:[#allocation2 + $0x308] sm:$0xff]
  %v1644 = vld [vmem:[#allocation2 + $0x310] sm:$0xff]
  %v1645 = vld [vmem:[#allocation2 + $0x318] sm:$0xff]
  %v1646 = vld [vmem:[#allocation2 + $0x320] sm:$0xff]
  %v1647 = vld [vmem:[#allocation2 + $0x328] sm:$0xff]
  %v1648 = vld [vmem:[#allocation2 + $0x330] sm:$0xff]
  %v1649 = vld [vmem:[#allocation2 + $0x338] sm:$0xff]
  %v1650 = vld [vmem:[#allocation2 + $0x340] sm:$0xff]
  %v1651 = vld [vmem:[#allocation2 + $0x348] sm:$0xff]
  %v1652 = vld [vmem:[#allocation2 + $0x350] sm:$0xff]
  %v1653 = vld [vmem:[#allocation2 + $0x358] sm:$0xff]
  %v1654 = vld [vmem:[#allocation2 + $0x360] sm:$0xff]
  %v1655 = vld [vmem:[#allocation2 + $0x368] sm:$0xff]
  %v1656 = vld [vmem:[#allocation2 + $0x370] sm:$0xff]
  %v1657 = vld [vmem:[#allocation2 + $0x378] sm:$0xff]
  %v1658 = vld [vmem:[#allocation2 + $0x380] sm:$0xff]
  %v1659 = vld [vmem:[#allocation2 + $0x388] sm:$0xff]
  %v1660 = vld [vmem:[#allocation2 + $0x390] sm:$0xff]
  %v1661 = vld [vmem:[#allocation2 + $0x398] sm:$0xff]
  %v1662 = vld [vmem:[#allocation2 + $0x3a0] sm:$0xff]
  %v1663 = vld [vmem:[#allocation2 + $0x3a8] sm:$0xff]
  %v1664 = vld [vmem:[#allocation2 + $0x3b0] sm:$0xff]
  %v1665 = vld [vmem:[#allocation2 + $0x3b8] sm:$0xff]
  %v1666 = vld [vmem:[#allocation2 + $0x3c0] sm:$0xff]
  %v1667 = vld [vmem:[#allocation2 + $0x3c8] sm:$0xff]
  %v1668 = vld [vmem:[#allocation2 + $0x3d0] sm:$0xff]
  %v1669 = vld [vmem:[#allocation2 + $0x3d8] sm:$0xff]
  %v1670 = vld [vmem:[#allocation2 + $0x3e0] sm:$0xff]
  %v1671 = vld [vmem:[#allocation2 + $0x3e8] sm:$0xff]
  %v1672 = vld [vmem:[#allocation2 + $0x3f0] sm:$0xff]
  %v1673 = vld [vmem:[#allocation2 + $0x3f8] sm:$0xff]
  %v1674 = vld [vmem:[#allocation2 + $0x400] sm:$0xff]
  %v1675 = vld [vmem:[#allocation2 + $0x408] sm:$0xff]
  %v1676 = vld [vmem:[#allocation2 + $0x410] sm:$0xff]
  %v1677 = vld [vmem:[#allocation2 + $0x418] sm:$0xff]
  %v1678 = vld [vmem:[#allocation2 + $0x420] sm:$0xff]
  %v1679 = vld [vmem:[#allocation2 + $0x428] sm:$0xff]
  %v1680 = vld [vmem:[#allocation2 + $0x430] sm:$0xff]
  %v1681 = vld [vmem:[#allocation2 + $0x438] sm:$0xff]
  %vm1682 = vcmask 130048
  %v1684 = vsel %vm1682, %v1542, 0
  %v1687 = vsel %vm1682, %v1545, 0
  %1689 = vmatprep.subr.mxu0 %v1547
  %1690 = vmatpush1.msra.mxu0 %v1546
  %1691 = vmatprep.subr.mxu0 %v1551
  %1692 = vmatpush1.msra.mxu0 %v1550
  %1693 = vmatprep.subr.mxu0 %v1555
  %1694 = vmatpush1.msra.mxu0 %v1554
  %1695 = vmatprep.subr.mxu0 %v1559
  %1696 = vmatpush1.msra.mxu0 %v1558
  %1697 = vmatprep.subr.mxu0 %v1563
  %1698 = vmatpush1.msra.mxu0 %v1562
  %1699 = vmatprep.subr.mxu0 %v1567
  %1700 = vmatpush1.msra.mxu0 %v1566
  %1701 = vmatprep.subr.mxu0 %v1571
  %1702 = vmatpush1.msra.mxu0 %v1570
  %1703 = vmatprep.subr.mxu0 %v1575
  %1704 = vmatpush1.msra.mxu0 %v1574
  %1705 = vmatprep.subr.mxu0 %v1579
  %1706 = vmatpush1.msra.mxu0 %v1578
  %1707 = vmatprep.subr.mxu0 %v1583
  %1708 = vmatpush1.msra.mxu0 %v1582
  %1709 = vmatprep.subr.mxu0 %v1587
  %1710 = vmatpush1.msra.mxu0 %v1586
  %1711 = vmatprep.subr.mxu0 %v1591
  %1712 = vmatpush1.msra.mxu0 %v1590
  %1713 = vmatprep.subr.mxu0 %v1595
  %1714 = vmatpush1.msra.mxu0 %v1594
  %1715 = vmatprep.subr.mxu0 %v1599
  %1716 = vmatpush1.msra.mxu0 %v1598
  %1717 = vmatprep.subr.mxu0 %v1603
  %1718 = vmatpush1.msra.mxu0 %v1602
  %1719 = vmatprep.subr.mxu0 %v1607
  %1720 = vmatpush1.msra.mxu0 %v1606
  %1721 = vmatprep.subr.mxu0 %v1611
  %1722 = vmatpush1.msra.mxu0 %v1610
  %1723 = vmatprep.subr.mxu0 %v1615
  %1724 = vmatpush1.msra.mxu0 %v1614
  %1725 = vmatprep.subr.mxu0 %v1619
  %1726 = vmatpush1.msra.mxu0 %v1618
  %1727 = vmatprep.subr.mxu0 %v1623
  %1728 = vmatpush1.msra.mxu0 %v1622
  %1729 = vmatprep.subr.mxu0 %v1627
  %1730 = vmatpush1.msra.mxu0 %v1626
  %1731 = vmatprep.subr.mxu0 %v1631
  %1732 = vmatpush1.msra.mxu0 %v1630
  %1733 = vmatprep.subr.mxu0 %v1635
  %1734 = vmatpush1.msra.mxu0 %v1634
  %1735 = vmatprep.subr.mxu0 %v1639
  %1736 = vmatpush1.msra.mxu0 %v1638
  %1737 = vmatprep.subr.mxu0 %v1643
  %1738 = vmatpush1.msra.mxu0 %v1642
  %1739 = vmatprep.subr.mxu0 %v1647
  %1740 = vmatpush1.msra.mxu0 %v1646
  %1741 = vmatprep.subr.mxu0 %v1651
  %1742 = vmatpush1.msra.mxu0 %v1650
  %1743 = vmatprep.subr.mxu0 %v1655
  %1744 = vmatpush1.msra.mxu0 %v1654
  %1745 = vmatprep.subr.mxu0 %v1659
  %1746 = vmatpush1.msra.mxu0 %v1658
  %1747 = vmatprep.subr.mxu0 %v1663
  %1748 = vmatpush1.msra.mxu0 %v1662
  %1749 = vmatprep.subr.mxu0 %v1667
  %1750 = vmatpush1.msra.mxu0 %v1666
  %1751 = vmatprep.subr.mxu0 %v1671
  %1752 = vmatpush1.msra.mxu0 %v1670
  %1753 = vmatprep.mubr.f32.mxu0 %v1541
  %1754 = vmatmul.mubr.f32.gmra.mrb[0].mxu0 %v1540
  %v1755 = vpop.f32.mrb[0].mxu0
  %v1756 = vadd.f32 0.0, %v1755
  %v1757 = vpop.f32.mrb[0].mxu0
  %v1758 = vadd.f32 0.0, %v1757
  %1759 = vmatprep.mubr.f32.mxu0 %v1544
  %1760 = vmatmul.mubr.f32.gmra.mrb[0].mxu0 %v1543
  %v1761 = vpop.f32.mrb[0].mxu0
  %v1762 = vadd.f32 0.0, %v1761
  %v1763 = vpop.f32.mrb[0].mxu0
  %v1764 = vadd.f32 0.0, %v1763
  %1765 = vdwg.mxu0
  %1766 = vmatprep.subr.mxu0 %v1675
  %1767 = vmatpush1.msra.mxu0 %v1674
  %1768 = vmatprep.subr.mxu0 %v1679
  %1769 = vmatpush1.msra.mxu0 %v1678
  %1770 = vmatprep.subr.mxu0 0.0
  %1771 = vmatpush1.msra.mxu0 0.0
  %1772 = vmatprep.subr.mxu0 0.0
  %1773 = vmatpush1.msra.mxu0 0.0
  %1774 = vmatprep.subr.mxu0 0.0
  %1775 = vmatpush1.msra.mxu0 0.0
  %1776 = vmatprep.subr.mxu0 0.0
  %1777 = vmatpush1.msra.mxu0 0.0
  %1778 = vmatprep.subr.mxu0 0.0
  %1779 = vmatpush1.msra.mxu0 0.0
  %1780 = vmatprep.subr.mxu0 0.0
  %1781 = vmatpush1.msra.mxu0 0.0
  %1782 = vmatprep.subr.mxu0 0.0
  %1783 = vmatpush1.msra.mxu0 0.0
  %1784 = vmatprep.subr.mxu0 0.0
  %1785 = vmatpush1.msra.mxu0 0.0
  %1786 = vmatprep.subr.mxu0 0.0
  %1787 = vmatpush1.msra.mxu0 0.0
  %1788 = vmatprep.subr.mxu0 0.0
  %1789 = vmatpush1.msra.mxu0 0.0
  %1790 = vmatprep.subr.mxu0 0.0
  %1791 = vmatpush1.msra.mxu0 0.0
  %1792 = vmatprep.subr.mxu0 0.0
  %1793 = vmatpush1.msra.mxu0 0.0
  %1794 = vmatprep.subr.mxu0 0.0
  %1795 = vmatpush1.msra.mxu0 0.0
  %1796 = vmatprep.subr.mxu0 0.0
  %1797 = vmatpush1.msra.mxu0 0.0
  %1798 = vmatprep.subr.mxu0 0.0
  %1799 = vmatpush1.msra.mxu0 0.0
  %1800 = vmatprep.subr.mxu0 0.0
  %1801 = vmatpush1.msra.mxu0 0.0
  %1802 = vmatprep.subr.mxu0 0.0
  %1803 = vmatpush1.msra.mxu0 0.0
  %1804 = vmatprep.subr.mxu0 0.0
  %1805 = vmatpush1.msra.mxu0 0.0
  %1806 = vmatprep.subr.mxu0 0.0
  %1807 = vmatpush1.msra.mxu0 0.0
  %1808 = vmatprep.subr.mxu0 0.0
  %1809 = vmatpush1.msra.mxu0 0.0
  %1810 = vmatprep.subr.mxu0 0.0
  %1811 = vmatpush1.msra.mxu0 0.0
  %1812 = vmatprep.subr.mxu0 0.0
  %1813 = vmatpush1.msra.mxu0 0.0
  %1814 = vmatprep.subr.mxu0 0.0
  %1815 = vmatpush1.msra.mxu0 0.0
  %1816 = vmatprep.subr.mxu0 0.0
  %1817 = vmatpush1.msra.mxu0 0.0
  %1818 = vmatprep.subr.mxu0 0.0
  %1819 = vmatpush1.msra.mxu0 0.0
  %1820 = vmatprep.subr.mxu0 0.0
  %1821 = vmatpush1.msra.mxu0 0.0
  %1822 = vmatprep.subr.mxu0 0.0
  %1823 = vmatpush1.msra.mxu0 0.0
  %1824 = vmatprep.subr.mxu0 0.0
  %1825 = vmatpush1.msra.mxu0 0.0
  %1826 = vmatprep.subr.mxu0 0.0
  %1827 = vmatpush1.msra.mxu0 0.0
  %1828 = vmatprep.subr.mxu0 0.0
  %1829 = vmatpush1.msra.mxu0 0.0
  %1830 = vmatprep.mubr.f32.mxu0 0.0
  %1831 = vmatmul.mubr.f32.gmra.mrb[0].mxu0 %v1684
  %v1832 = vpop.f32.mrb[0].mxu0
  %v1833 = vadd.f32 %v1756, %v1832
  %v1834 = vpop.f32.mrb[0].mxu0
  %v1835 = vadd.f32 %v1758, %v1834
  %1836 = vmatprep.mubr.f32.mxu0 0.0
  %1837 = vmatmul.mubr.f32.gmra.mrb[0].mxu0 %v1687
  %v1838 = vpop.f32.mrb[0].mxu0
  %v1839 = vadd.f32 %v1762, %v1838
  %v1840 = vpop.f32.mrb[0].mxu0
  %v1841 = vadd.f32 %v1764, %v1840
  %1842 = vdwg.mxu0
  %1843 = vmatprep.subr.mxu0 %v1549
  %1844 = vmatpush1.msra.mxu0 %v1548
  %1845 = vmatprep.subr.mxu0 %v1553
  %1846 = vmatpush1.msra.mxu0 %v1552
  %1847 = vmatprep.subr.mxu0 %v1557
  %1848 = vmatpush1.msra.mxu0 %v1556
  %1849 = vmatprep.subr.mxu0 %v1561
  %1850 = vmatpush1.msra.mxu0 %v1560
  %1851 = vmatprep.subr.mxu0 %v1565
  %1852 = vmatpush1.msra.mxu0 %v1564
  %1853 = vmatprep.subr.mxu0 %v1569
  %1854 = vmatpush1.msra.mxu0 %v1568
  %1855 = vmatprep.subr.mxu0 %v1573
  %1856 = vmatpush1.msra.mxu0 %v1572
  %1857 = vmatprep.subr.mxu0 %v1577
  %1858 = vmatpush1.msra.mxu0 %v1576
  %1859 = vmatprep.subr.mxu0 %v1581
  %1860 = vmatpush1.msra.mxu0 %v1580
  %1861 = vmatprep.subr.mxu0 %v1585
  %1862 = vmatpush1.msra.mxu0 %v1584
  %1863 = vmatprep.subr.mxu0 %v1589
  %1864 = vmatpush1.msra.mxu0 %v1588
  %1865 = vmatprep.subr.mxu0 %v1593
  %1866 = vmatpush1.msra.mxu0 %v1592
  %1867 = vmatprep.subr.mxu0 %v1597
  %1868 = vmatpush1.msra.mxu0 %v1596
  %1869 = vmatprep.subr.mxu0 %v1601
  %1870 = vmatpush1.msra.mxu0 %v1600
  %1871 = vmatprep.subr.mxu0 %v1605
  %1872 = vmatpush1.msra.mxu0 %v1604
  %1873 = vmatprep.subr.mxu0 %v1609
  %1874 = vmatpush1.msra.mxu0 %v1608
  %1875 = vmatprep.subr.mxu0 %v1613
  %1876 = vmatpush1.msra.mxu0 %v1612
  %1877 = vmatprep.subr.mxu0 %v1617
  %1878 = vmatpush1.msra.mxu0 %v1616
  %1879 = vmatprep.subr.mxu0 %v1621
  %1880 = vmatpush1.msra.mxu0 %v1620
  %1881 = vmatprep.subr.mxu0 %v1625
  %1882 = vmatpush1.msra.mxu0 %v1624
  %1883 = vmatprep.subr.mxu0 %v1629
  %1884 = vmatpush1.msra.mxu0 %v1628
  %1885 = vmatprep.subr.mxu0 %v1633
  %1886 = vmatpush1.msra.mxu0 %v1632
  %1887 = vmatprep.subr.mxu0 %v1637
  %1888 = vmatpush1.msra.mxu0 %v1636
  %1889 = vmatprep.subr.mxu0 %v1641
  %1890 = vmatpush1.msra.mxu0 %v1640
  %1891 = vmatprep.subr.mxu0 %v1645
  %1892 = vmatpush1.msra.mxu0 %v1644
  %1893 = vmatprep.subr.mxu0 %v1649
  %1894 = vmatpush1.msra.mxu0 %v1648
  %1895 = vmatprep.subr.mxu0 %v1653
  %1896 = vmatpush1.msra.mxu0 %v1652
  %1897 = vmatprep.subr.mxu0 %v1657
  %1898 = vmatpush1.msra.mxu0 %v1656
  %1899 = vmatprep.subr.mxu0 %v1661
  %1900 = vmatpush1.msra.mxu0 %v1660
  %1901 = vmatprep.subr.mxu0 %v1665
  %1902 = vmatpush1.msra.mxu0 %v1664
  %1903 = vmatprep.subr.mxu0 %v1669
  %1904 = vmatpush1.msra.mxu0 %v1668
  %1905 = vmatprep.subr.mxu0 %v1673
  %1906 = vmatpush1.msra.mxu0 %v1672
  %1907 = vmatprep.mubr.f32.mxu0 %v1541
  %1908 = vmatmul.mubr.f32.gmra.mrb[0].mxu0 %v1540
  %v1909 = vpop.f32.mrb[0].mxu0
  %v1910 = vadd.f32 0.0, %v1909
  %v1911 = vpop.f32.mrb[0].mxu0
  %v1912 = vadd.f32 0.0, %v1911
  %1913 = vmatprep.mubr.f32.mxu0 %v1544
  %1914 = vmatmul.mubr.f32.gmra.mrb[0].mxu0 %v1543
  %v1915 = vpop.f32.mrb[0].mxu0
  %v1916 = vadd.f32 0.0, %v1915
  %v1917 = vpop.f32.mrb[0].mxu0
  %v1918 = vadd.f32 0.0, %v1917
  %1919 = vdwg.mxu0
  %1920 = vmatprep.subr.mxu0 %v1677
  %1921 = vmatpush1.msra.mxu0 %v1676
  %1922 = vmatprep.subr.mxu0 %v1681
  %1923 = vmatpush1.msra.mxu0 %v1680
  %1924 = vmatprep.subr.mxu0 0.0
  %1925 = vmatpush1.msra.mxu0 0.0
  %1926 = vmatprep.subr.mxu0 0.0
  %1927 = vmatpush1.msra.mxu0 0.0
  %1928 = vmatprep.subr.mxu0 0.0
  %1929 = vmatpush1.msra.mxu0 0.0
  %1930 = vmatprep.subr.mxu0 0.0
  %1931 = vmatpush1.msra.mxu0 0.0
  %1932 = vmatprep.subr.mxu0 0.0
  %1933 = vmatpush1.msra.mxu0 0.0
  %1934 = vmatprep.subr.mxu0 0.0
  %1935 = vmatpush1.msra.mxu0 0.0
  %1936 = vmatprep.subr.mxu0 0.0
  %1937 = vmatpush1.msra.mxu0 0.0
  %1938 = vmatprep.subr.mxu0 0.0
  %1939 = vmatpush1.msra.mxu0 0.0
  %1940 = vmatprep.subr.mxu0 0.0
  %1941 = vmatpush1.msra.mxu0 0.0
  %1942 = vmatprep.subr.mxu0 0.0
  %1943 = vmatpush1.msra.mxu0 0.0
  %1944 = vmatprep.subr.mxu0 0.0
  %1945 = vmatpush1.msra.mxu0 0.0
  %1946 = vmatprep.subr.mxu0 0.0
  %1947 = vmatpush1.msra.mxu0 0.0
  %1948 = vmatprep.subr.mxu0 0.0
  %1949 = vmatpush1.msra.mxu0 0.0
  %1950 = vmatprep.subr.mxu0 0.0
  %1951 = vmatpush1.msra.mxu0 0.0
  %1952 = vmatprep.subr.mxu0 0.0
  %1953 = vmatpush1.msra.mxu0 0.0
  %1954 = vmatprep.subr.mxu0 0.0
  %1955 = vmatpush1.msra.mxu0 0.0
  %1956 = vmatprep.subr.mxu0 0.0
  %1957 = vmatpush1.msra.mxu0 0.0
  %1958 = vmatprep.subr.mxu0 0.0
  %1959 = vmatpush1.msra.mxu0 0.0
  %1960 = vmatprep.subr.mxu0 0.0
  %1961 = vmatpush1.msra.mxu0 0.0
  %1962 = vmatprep.subr.mxu0 0.0
  %1963 = vmatpush1.msra.mxu0 0.0
  %1964 = vmatprep.subr.mxu0 0.0
  %1965 = vmatpush1.msra.mxu0 0.0
  %1966 = vmatprep.subr.mxu0 0.0
  %1967 = vmatpush1.msra.mxu0 0.0
  %1968 = vmatprep.subr.mxu0 0.0
  %1969 = vmatpush1.msra.mxu0 0.0
  %1970 = vmatprep.subr.mxu0 0.0
  %1971 = vmatpush1.msra.mxu0 0.0
  %1972 = vmatprep.subr.mxu0 0.0
  %1973 = vmatpush1.msra.mxu0 0.0
  %1974 = vmatprep.subr.mxu0 0.0
  %1975 = vmatpush1.msra.mxu0 0.0
  %1976 = vmatprep.subr.mxu0 0.0
  %1977 = vmatpush1.msra.mxu0 0.0
  %1978 = vmatprep.subr.mxu0 0.0
  %1979 = vmatpush1.msra.mxu0 0.0
  %1980 = vmatprep.subr.mxu0 0.0
  %1981 = vmatpush1.msra.mxu0 0.0
  %1982 = vmatprep.subr.mxu0 0.0
  %1983 = vmatpush1.msra.mxu0 0.0
  %1984 = vmatprep.mubr.f32.mxu0 0.0
  %1985 = vmatmul.mubr.f32.gmra.mrb[0].mxu0 %v1684
  %v1986 = vpop.f32.mrb[0].mxu0
  %v1987 = vadd.f32 %v1910, %v1986
  %v1988 = vpop.f32.mrb[0].mxu0
  %v1989 = vadd.f32 %v1912, %v1988
  %1990 = vmatprep.mubr.f32.mxu0 0.0
  %1991 = vmatmul.mubr.f32.gmra.mrb[0].mxu0 %v1687
  %v1992 = vpop.f32.mrb[0].mxu0
  %v1993 = vadd.f32 %v1916, %v1992
  %v1994 = vpop.f32.mrb[0].mxu0
  %v1995 = vadd.f32 %v1918, %v1994
  %1996 = vdwg.mxu0
  %v1997 = vadd.f32 %v1833, %v1835
  %v1998 = vadd.f32 %v1997, %v1987
  %v1999 = vadd.f32 %v1998, %v1989
  %2000 = vadd.xlane.f32.xlu0 %v1999
  %v2001 = vpop.xlane.xlu0 %2000
  %v2002 = vadd.f32 %v1839, %v1841
  %v2003 = vadd.f32 %v2002, %v1993
  %v2004 = vadd.f32 %v2003, %v1995
  %2005 = vadd.xlane.f32.xlu0 %v2004
  %v2006 = vpop.xlane.xlu0 %2005
  %v2007 = vmul.f32 %v1833, %v1833
  %v2008 = vmul.f32 %v1835, %v1835
  %v2009 = vmul.f32 %v1987, %v1987
  %v2010 = vmul.f32 %v1989, %v1989
  %v2011 = vmul.f32 %v1839, %v1839
  %v2012 = vmul.f32 %v1841, %v1841
  %v2013 = vmul.f32 %v1993, %v1993
  %v2014 = vmul.f32 %v1995, %v1995
  %v2015 = vadd.f32 %v2007, %v2008
  %v2016 = vadd.f32 %v2015, %v2009
  %v2017 = vadd.f32 %v2016, %v2010
  %2018 = vadd.xlane.f32.xlu0 %v2017
  %v2019 = vpop.xlane.xlu0 %2018
  %v2020 = vadd.f32 %v2011, %v2012
  %v2021 = vadd.f32 %v2020, %v2013
  %v2022 = vadd.f32 %v2021, %v2014
  %2023 = vadd.xlane.f32.xlu0 %v2022
  %v2024 = vpop.xlane.xlu0 %2023
  %v2025 = vmul.f32 %v2001, 0.001953125
  %v2026 = vmul.f32 %v2006, 0.001953125
  %v2027 = vmul.f32 %v2019, 0.001953125
  %v2028 = vmul.f32 %v2024, 0.001953125
  %v2029 = vmul.f32 %v2025, %v2025
  %v2030 = vmul.f32 %v2026, %v2026
  %v2031 = vsub.f32 %v2027, %v2029
  %v2032 = vsub.f32 %v2028, %v2030
  %v2033 = vsub.f32 %v1833, %v2025
  %v2034 = vsub.f32 %v1835, %v2025
  %v2035 = vsub.f32 %v1987, %v2025
  %v2036 = vsub.f32 %v1989, %v2025
  %v2037 = vsub.f32 %v1839, %v2026
  %v2038 = vsub.f32 %v1841, %v2026
  %v2039 = vsub.f32 %v1993, %v2026
  %v2040 = vsub.f32 %v1995, %v2026
  %v2041 = vadd.f32 %v2031, 1e-05
  %v2042 = vadd.f32 %v2032, 1e-05
  %v2043 = vrsqrt.pop %v2041
  %v2044 = vrsqrt.pop %v2042
  %v2045 = vmul.f32 %v2033, %v2043
  %v2046 = vmul.f32 %v2034, %v2043
  %v2047 = vmul.f32 %v2035, %v2043
  %v2048 = vmul.f32 %v2036, %v2043
  %v2049 = vmul.f32 %v2037, %v2044
  %v2050 = vmul.f32 %v2038, %v2044
  %v2051 = vmul.f32 %v2039, %v2044
  %v2052 = vmul.f32 %v2040, %v2044
  %v2053 = vmax.f32 %v2045, 0.0
  %v2054 = vmax.f32 %v2046, 0.0
  %v2055 = vmax.f32 %v2047, 0.0
  %v2056 = vmax.f32 %v2048, 0.0
  %v2057 = vmax.f32 %v2049, 0.0
  %v2058 = vmax.f32 %v2050, 0.0
  %v2059 = vmax.f32 %v2051, 0.0
  %v2060 = vmax.f32 %v2052, 0.0
  %2061 = vst [vmem:[%s4] sm:$0xff] %v2053
  %2062 = vst [vmem:[%s4 + $0x8] sm:$0xff] %v2054
  %2063 = vst [vmem:[%s4 + $0x10] sm:$0xff] %v2055
  %2064 = vst [vmem:[%s4 + $0x18] sm:$0xff] %v2056
  %2065 = vst [vmem:[%s4 + $0x20] sm:$0xff] %v2057
  %2066 = vst [vmem:[%s4 + $0x28] sm:$0xff] %v2058
  %2067 = vst [vmem:[%s4 + $0x30] sm:$0xff] %v2059
  %2068 = vst [vmem:[%s4 + $0x38] sm:$0xff] %v2060
  %2069 = vst [vmem:[%s4 + $0x40] sm:$0xf] %v311
  %2070 = vst [vmem:[%s4 + $0x48] sm:$0xf] %v312
  %2071 = vst [vmem:[%s4 + $0x50] sm:$0xf] %v313
  %2072 = vst [vmem:[%s4 + $0x58] sm:$0xf] %v314
  // Predicated region
  $region18: #{_lambda_.1} parent=0 // pred_check
    _
  $region19: #{_lambda_.1} parent=0 // pred_check_branch
    %2074 = sbr.rel (0) target = $region21
  $region20: #{_lambda_.1} parent=0 // pred_region
    _
  $region21: #{_lambda_.1} parent=0 // pred_fallthru
    _
  // Predicated region
  $region22: #{_lambda_.1} parent=0 // pred_check
    _
  $region23: #{_lambda_.1} parent=0 // pred_check_branch
    %2076 = sbr.rel (0) target = $region25
  $region24: #{_lambda_.1} parent=0 // pred_region
    _
  $region25: #{_lambda_.1} parent=0 // pred_fallthru
    _

</llo_original>
